<compile_context>
chip_gen: v7x
topology: tpu7x:2x2x1
jax: 0.10.0
libtpu: 0.0.40
codegen_flags: <defaults>
</compile_context>

<pallas_src>
import jax
import jax.numpy as jnp
from jax.experimental import pallas as pl
from jax.experimental.pallas import tpu as pltpu
import numpy as np

HIDDEN_DIM = 32
INPUT_DIM = 1          # forward() reshapes each x_i to (1, 1) => input_dim must be 1
OUTPUT_DIM = 1
SEQ_LEN = 8


def ode_rnn_kernel(dt_ref, x_ref,
                   win_ref, bcomb_ref,
                   wcat_ref, bode_ref, whid_ref,
                   wdec_ref, bdec_ref,
                   out_ref):
    H = HIDDEN_DIM

    # Hoist all weight loads out of the recurrence.
    win    = win_ref[...]     # (1, H)    row form of W_in (torch W_in is (H, 1))
    b_comb = bcomb_ref[...]   # (1, H)    b_in + b_hid folded into one constant
    w_cat  = wcat_ref[...]    # (H, 2H)   [W_ode^T | W_hid^T]
    b_ode  = bode_ref[...]    # (1, H)
    whid   = whid_ref[...]    # (H, H)    W_hid^T

    # Input path is independent of h: compute it once for every step.
    # x_ref is (SEQ_LEN, 1); broadcast against win (1, H) -> (SEQ_LEN, H).
    lin_in_all = x_ref[...] * win + b_comb

    h = jnp.zeros((1, H), jnp.float32)

    # Fully unrolled recurrence (SEQ_LEN is small & static): gives the scheduler
    # cross-iteration visibility and makes every SMEM / slice index static.
    for i in range(SEQ_LEN):
        dt_i = dt_ref[i]                        # scalar SMEM read; dt[0] == 0
        # One fused MXU pass: hw = [h @ W_ode^T | h @ W_hid^T], 2H = 64 lanes.
        hw = jnp.dot(h, w_cat, preferred_element_type=jnp.float32)   # (1, 2H)
        f = jnp.tanh(hw[:, :H] + b_ode)         # Euler derivative tanh(h W_ode^T + b_ode)
        # (h + dt*f) @ W_hid^T  ==  h @ W_hid^T  +  dt * (f @ W_hid^T)
        lin_hid = hw[:, H:] + dt_i * jnp.dot(f, whid,
                                             preferred_element_type=jnp.float32)
        h = jnp.tanh(lin_in_all[i:i + 1, :] + lin_hid)
        # i == 0: h starts at 0 and dt[0] == 0, so hw == 0 and lin_hid == 0,
        # reproducing the PyTorch h_i = 0 branch exactly.

    out_ref[...] = (jnp.dot(h, wdec_ref[...], preferred_element_type=jnp.float32)
                    + bdec_ref[...])


def ode_rnn_forward(t, x, W_in, b_in, W_hid, b_hid, W_ode, b_ode, W_dec, b_dec):
    """Wrapper: repacks torch-layout params into kernel layout and calls Pallas."""
    t = jnp.reshape(t, (-1,)).astype(jnp.float32)
    x = jnp.reshape(x, (-1,)).astype(jnp.float32)

    # dt[0] = 0, dt[i] = t[i] - t[i-1]  (with h0 = 0 this makes the i==0 mask redundant)
    dt = jnp.concatenate([jnp.zeros((1,), jnp.float32), t[1:] - t[:-1]])
    x_col = x.reshape(SEQ_LEN, 1)

    win_row = W_in.T.reshape(1, HIDDEN_DIM)                 # (1, H)
    b_comb  = (b_in + b_hid).reshape(1, HIDDEN_DIM)         # (1, H)
    w_cat   = jnp.concatenate([W_ode.T, W_hid.T], axis=1)   # (H, 2H)
    b_ode_r = b_ode.reshape(1, HIDDEN_DIM)
    whid_t  = W_hid.T                                       # (H, H)
    wdec_t  = W_dec.T                                       # (H, O)
    b_dec_r = b_dec.reshape(1, OUTPUT_DIM)

    smem = pl.BlockSpec(memory_space=pltpu.MemorySpace.SMEM)
    vmem = pl.BlockSpec(memory_space=pltpu.MemorySpace.VMEM)

    # No grid / tiling: total resident footprint is ~10 KiB, far under VMEM on
    # every generation; the whole sequential recurrence runs in one invocation.
    return pl.pallas_call(
        ode_rnn_kernel,
        out_shape=jax.ShapeDtypeStruct((1, OUTPUT_DIM), jnp.float32),
        in_specs=[smem] + [vmem] * 8,
        out_specs=vmem,
    )(dt, x_col, win_row, b_comb, w_cat, b_ode_r, whid_t, wdec_t, b_dec_r)


def ode_rnn_reference(t, x, W_in, b_in, W_hid, b_hid, W_ode, b_ode, W_dec, b_dec):
    """Pure-JAX mirror of the PyTorch forward (for correctness check)."""
    t = jnp.reshape(t, (-1,)).astype(jnp.float32)
    h = jnp.zeros((1, HIDDEN_DIM), jnp.float32)
    h_i = jnp.zeros((1, HIDDEN_DIM), jnp.float32)
    for i in range(x.shape[0]):
        x_i = jnp.reshape(x[i].astype(jnp.float32), (1, 1))
        if i > 0:
            dt = t[i] - t[i - 1]
            f = jnp.tanh(h @ W_ode.T + b_ode)
            h_i = h + dt * f
        h = jnp.tanh(x_i @ W_in.T + b_in + h_i @ W_hid.T + b_hid)
    return h @ W_dec.T + b_dec


if __name__ == "__main__":
    key = jax.random.PRNGKey(0)
    ks = jax.random.split(key, 10)

    # Deterministic synthetic parameters (torch nn.Linear weight/bias shapes).
    W_in  = jax.random.normal(ks[0], (HIDDEN_DIM, INPUT_DIM), jnp.float32) * 0.2
    b_in  = jax.random.normal(ks[1], (HIDDEN_DIM,), jnp.float32) * 0.1
    W_hid = jax.random.normal(ks[2], (HIDDEN_DIM, HIDDEN_DIM), jnp.float32) * 0.2
    b_hid = jax.random.normal(ks[3], (HIDDEN_DIM,), jnp.float32) * 0.1
    W_ode = jax.random.normal(ks[4], (HIDDEN_DIM, HIDDEN_DIM), jnp.float32) * 0.2
    b_ode = jax.random.normal(ks[5], (HIDDEN_DIM,), jnp.float32) * 0.1
    W_dec = jax.random.normal(ks[6], (OUTPUT_DIM, HIDDEN_DIM), jnp.float32) * 0.2
    b_dec = jax.random.normal(ks[7], (OUTPUT_DIM,), jnp.float32) * 0.1

    # Inputs: t monotone increasing times, x a scalar sequence of length SEQ_LEN.
    t = jnp.cumsum(jax.random.uniform(ks[8], (SEQ_LEN,), jnp.float32, 0.1, 0.5))
    x = jax.random.normal(ks[9], (SEQ_LEN,), jnp.float32)

    out = ode_rnn_forward(t, x, W_in, b_in, W_hid, b_hid,
                          W_ode, b_ode, W_dec, b_dec)
    out = jax.block_until_ready(out)

    ref = ode_rnn_reference(t, x, W_in, b_in, W_hid, b_hid,
                            W_ode, b_ode, W_dec, b_dec)

    np.testing.assert_allclose(np.asarray(out), np.asarray(ref),
                               rtol=1e-4, atol=1e-4)
    assert out.shape == (1, OUTPUT_DIM)
    print("KERNEL_OK")
</pallas_src>

<mosaic_0001>
module attributes {stable_mosaic.version = 11 : i64} {
  func.func @ode_rnn_kernel(%arg0: memref<8xf32, #tpu.memory_space<smem>>, %arg1: memref<8x1xf32, #tpu.memory_space<vmem>>, %arg2: memref<1x32xf32, #tpu.memory_space<vmem>>, %arg3: memref<1x32xf32, #tpu.memory_space<vmem>>, %arg4: memref<32x64xf32, #tpu.memory_space<vmem>>, %arg5: memref<1x32xf32, #tpu.memory_space<vmem>>, %arg6: memref<32x32xf32, #tpu.memory_space<vmem>>, %arg7: memref<32x1xf32, #tpu.memory_space<vmem>>, %arg8: memref<1x1xf32, #tpu.memory_space<vmem>>, %arg9: memref<1x1xf32, #tpu.memory_space<vmem>>) attributes {dimension_semantics = [], scalar_prefetch = 0 : i64, scratch_operands = 0 : i64, tpu.core_type = #tpu.core_type<tc>} {
    %c0 = arith.constant 0 : index
    %c0_0 = arith.constant 0 : index
    %0 = vector.load %arg2[%c0, %c0_0] : memref<1x32xf32, #tpu.memory_space<vmem>>, vector<1x32xf32>
    %c0_1 = arith.constant 0 : index
    %c0_2 = arith.constant 0 : index
    %1 = vector.load %arg3[%c0_1, %c0_2] : memref<1x32xf32, #tpu.memory_space<vmem>>, vector<1x32xf32>
    %c0_3 = arith.constant 0 : index
    %c0_4 = arith.constant 0 : index
    %2 = vector.load %arg4[%c0_3, %c0_4] : memref<32x64xf32, #tpu.memory_space<vmem>>, vector<32x64xf32>
    %c0_5 = arith.constant 0 : index
    %c0_6 = arith.constant 0 : index
    %3 = vector.load %arg5[%c0_5, %c0_6] : memref<1x32xf32, #tpu.memory_space<vmem>>, vector<1x32xf32>
    %c0_7 = arith.constant 0 : index
    %c0_8 = arith.constant 0 : index
    %4 = vector.load %arg6[%c0_7, %c0_8] : memref<32x32xf32, #tpu.memory_space<vmem>>, vector<32x32xf32>
    %c0_9 = arith.constant 0 : index
    %c0_10 = arith.constant 0 : index
    %5 = vector.load %arg1[%c0_9, %c0_10] : memref<8x1xf32, #tpu.memory_space<vmem>>, vector<8x1xf32>
    %6 = vector.broadcast %5 : vector<8x1xf32> to vector<8x32xf32>
    %7 = vector.broadcast %0 : vector<1x32xf32> to vector<8x32xf32>
    %8 = arith.mulf %6, %7 : vector<8x32xf32>
    %9 = vector.broadcast %1 : vector<1x32xf32> to vector<8x32xf32>
    %10 = arith.addf %8, %9 : vector<8x32xf32>
    %cst = arith.constant 0.000000e+00 : f32
    %11 = vector.broadcast %cst : f32 to vector<1x32xf32>
    %c0_11 = arith.constant 0 : index
    %12 = memref.load %arg0[%c0_11] : memref<8xf32, #tpu.memory_space<smem>>
    %cst_12 = arith.constant dense<0.000000e+00> : vector<1x64xf32>
    %13 = tpu.matmul %11, %2, %cst_12 {dimension_numbers = #tpu.dot_dimension_numbers<[1], [0], [0], [1], [0, 0, 1, 1], [], []>} : vector<1x32xf32>, vector<32x64xf32>, vector<1x64xf32> -> vector<1x64xf32>
    %14 = vector.extract_strided_slice %13 {offsets = [0, 0], sizes = [1, 32], strides = [1, 1]} : vector<1x64xf32> to vector<1x32xf32>
    %15 = arith.addf %14, %3 : vector<1x32xf32>
    %16 = math.tanh %15 : vector<1x32xf32>
    %17 = vector.extract_strided_slice %13 {offsets = [0, 32], sizes = [1, 32], strides = [1, 1]} : vector<1x64xf32> to vector<1x32xf32>
    %cst_13 = arith.constant dense<0.000000e+00> : vector<1x32xf32>
    %18 = tpu.matmul %16, %4, %cst_13 {dimension_numbers = #tpu.dot_dimension_numbers<[1], [0], [0], [1], [0, 0, 1, 1], [], []>} : vector<1x32xf32>, vector<32x32xf32>, vector<1x32xf32> -> vector<1x32xf32>
    %19 = vector.broadcast %12 : f32 to vector<1x32xf32>
    %20 = arith.mulf %19, %18 : vector<1x32xf32>
    %21 = arith.addf %17, %20 : vector<1x32xf32>
    %22 = vector.extract_strided_slice %10 {offsets = [0, 0], sizes = [1, 32], strides = [1, 1]} : vector<8x32xf32> to vector<1x32xf32>
    %23 = arith.addf %22, %21 : vector<1x32xf32>
    %24 = math.tanh %23 : vector<1x32xf32>
    %c1 = arith.constant 1 : index
    %25 = memref.load %arg0[%c1] : memref<8xf32, #tpu.memory_space<smem>>
    %cst_14 = arith.constant dense<0.000000e+00> : vector<1x64xf32>
    %26 = tpu.matmul %24, %2, %cst_14 {dimension_numbers = #tpu.dot_dimension_numbers<[1], [0], [0], [1], [0, 0, 1, 1], [], []>} : vector<1x32xf32>, vector<32x64xf32>, vector<1x64xf32> -> vector<1x64xf32>
    %27 = vector.extract_strided_slice %26 {offsets = [0, 0], sizes = [1, 32], strides = [1, 1]} : vector<1x64xf32> to vector<1x32xf32>
    %28 = arith.addf %27, %3 : vector<1x32xf32>
    %29 = math.tanh %28 : vector<1x32xf32>
    %30 = vector.extract_strided_slice %26 {offsets = [0, 32], sizes = [1, 32], strides = [1, 1]} : vector<1x64xf32> to vector<1x32xf32>
    %cst_15 = arith.constant dense<0.000000e+00> : vector<1x32xf32>
    %31 = tpu.matmul %29, %4, %cst_15 {dimension_numbers = #tpu.dot_dimension_numbers<[1], [0], [0], [1], [0, 0, 1, 1], [], []>} : vector<1x32xf32>, vector<32x32xf32>, vector<1x32xf32> -> vector<1x32xf32>
    %32 = vector.broadcast %25 : f32 to vector<1x32xf32>
    %33 = arith.mulf %32, %31 : vector<1x32xf32>
    %34 = arith.addf %30, %33 : vector<1x32xf32>
    %35 = vector.extract_strided_slice %10 {offsets = [1, 0], sizes = [1, 32], strides = [1, 1]} : vector<8x32xf32> to vector<1x32xf32>
    %36 = arith.addf %35, %34 : vector<1x32xf32>
    %37 = math.tanh %36 : vector<1x32xf32>
    %c2 = arith.constant 2 : index
    %38 = memref.load %arg0[%c2] : memref<8xf32, #tpu.memory_space<smem>>
    %cst_16 = arith.constant dense<0.000000e+00> : vector<1x64xf32>
    %39 = tpu.matmul %37, %2, %cst_16 {dimension_numbers = #tpu.dot_dimension_numbers<[1], [0], [0], [1], [0, 0, 1, 1], [], []>} : vector<1x32xf32>, vector<32x64xf32>, vector<1x64xf32> -> vector<1x64xf32>
    %40 = vector.extract_strided_slice %39 {offsets = [0, 0], sizes = [1, 32], strides = [1, 1]} : vector<1x64xf32> to vector<1x32xf32>
    %41 = arith.addf %40, %3 : vector<1x32xf32>
    %42 = math.tanh %41 : vector<1x32xf32>
    %43 = vector.extract_strided_slice %39 {offsets = [0, 32], sizes = [1, 32], strides = [1, 1]} : vector<1x64xf32> to vector<1x32xf32>
    %cst_17 = arith.constant dense<0.000000e+00> : vector<1x32xf32>
    %44 = tpu.matmul %42, %4, %cst_17 {dimension_numbers = #tpu.dot_dimension_numbers<[1], [0], [0], [1], [0, 0, 1, 1], [], []>} : vector<1x32xf32>, vector<32x32xf32>, vector<1x32xf32> -> vector<1x32xf32>
    %45 = vector.broadcast %38 : f32 to vector<1x32xf32>
    %46 = arith.mulf %45, %44 : vector<1x32xf32>
    %47 = arith.addf %43, %46 : vector<1x32xf32>
    %48 = vector.extract_strided_slice %10 {offsets = [2, 0], sizes = [1, 32], strides = [1, 1]} : vector<8x32xf32> to vector<1x32xf32>
    %49 = arith.addf %48, %47 : vector<1x32xf32>
    %50 = math.tanh %49 : vector<1x32xf32>
    %c3 = arith.constant 3 : index
    %51 = memref.load %arg0[%c3] : memref<8xf32, #tpu.memory_space<smem>>
    %cst_18 = arith.constant dense<0.000000e+00> : vector<1x64xf32>
    %52 = tpu.matmul %50, %2, %cst_18 {dimension_numbers = #tpu.dot_dimension_numbers<[1], [0], [0], [1], [0, 0, 1, 1], [], []>} : vector<1x32xf32>, vector<32x64xf32>, vector<1x64xf32> -> vector<1x64xf32>
    %53 = vector.extract_strided_slice %52 {offsets = [0, 0], sizes = [1, 32], strides = [1, 1]} : vector<1x64xf32> to vector<1x32xf32>
    %54 = arith.addf %53, %3 : vector<1x32xf32>
    %55 = math.tanh %54 : vector<1x32xf32>
    %56 = vector.extract_strided_slice %52 {offsets = [0, 32], sizes = [1, 32], strides = [1, 1]} : vector<1x64xf32> to vector<1x32xf32>
    %cst_19 = arith.constant dense<0.000000e+00> : vector<1x32xf32>
    %57 = tpu.matmul %55, %4, %cst_19 {dimension_numbers = #tpu.dot_dimension_numbers<[1], [0], [0], [1], [0, 0, 1, 1], [], []>} : vector<1x32xf32>, vector<32x32xf32>, vector<1x32xf32> -> vector<1x32xf32>
    %58 = vector.broadcast %51 : f32 to vector<1x32xf32>
    %59 = arith.mulf %58, %57 : vector<1x32xf32>
    %60 = arith.addf %56, %59 : vector<1x32xf32>
    %61 = vector.extract_strided_slice %10 {offsets = [3, 0], sizes = [1, 32], strides = [1, 1]} : vector<8x32xf32> to vector<1x32xf32>
    %62 = arith.addf %61, %60 : vector<1x32xf32>
    %63 = math.tanh %62 : vector<1x32xf32>
    %c4 = arith.constant 4 : index
    %64 = memref.load %arg0[%c4] : memref<8xf32, #tpu.memory_space<smem>>
    %cst_20 = arith.constant dense<0.000000e+00> : vector<1x64xf32>
    %65 = tpu.matmul %63, %2, %cst_20 {dimension_numbers = #tpu.dot_dimension_numbers<[1], [0], [0], [1], [0, 0, 1, 1], [], []>} : vector<1x32xf32>, vector<32x64xf32>, vector<1x64xf32> -> vector<1x64xf32>
    %66 = vector.extract_strided_slice %65 {offsets = [0, 0], sizes = [1, 32], strides = [1, 1]} : vector<1x64xf32> to vector<1x32xf32>
    %67 = arith.addf %66, %3 : vector<1x32xf32>
    %68 = math.tanh %67 : vector<1x32xf32>
    %69 = vector.extract_strided_slice %65 {offsets = [0, 32], sizes = [1, 32], strides = [1, 1]} : vector<1x64xf32> to vector<1x32xf32>
    %cst_21 = arith.constant dense<0.000000e+00> : vector<1x32xf32>
    %70 = tpu.matmul %68, %4, %cst_21 {dimension_numbers = #tpu.dot_dimension_numbers<[1], [0], [0], [1], [0, 0, 1, 1], [], []>} : vector<1x32xf32>, vector<32x32xf32>, vector<1x32xf32> -> vector<1x32xf32>
    %71 = vector.broadcast %64 : f32 to vector<1x32xf32>
    %72 = arith.mulf %71, %70 : vector<1x32xf32>
    %73 = arith.addf %69, %72 : vector<1x32xf32>
    %74 = vector.extract_strided_slice %10 {offsets = [4, 0], sizes = [1, 32], strides = [1, 1]} : vector<8x32xf32> to vector<1x32xf32>
    %75 = arith.addf %74, %73 : vector<1x32xf32>
    %76 = math.tanh %75 : vector<1x32xf32>
    %c5 = arith.constant 5 : index
    %77 = memref.load %arg0[%c5] : memref<8xf32, #tpu.memory_space<smem>>
    %cst_22 = arith.constant dense<0.000000e+00> : vector<1x64xf32>
    %78 = tpu.matmul %76, %2, %cst_22 {dimension_numbers = #tpu.dot_dimension_numbers<[1], [0], [0], [1], [0, 0, 1, 1], [], []>} : vector<1x32xf32>, vector<32x64xf32>, vector<1x64xf32> -> vector<1x64xf32>
    %79 = vector.extract_strided_slice %78 {offsets = [0, 0], sizes = [1, 32], strides = [1, 1]} : vector<1x64xf32> to vector<1x32xf32>
    %80 = arith.addf %79, %3 : vector<1x32xf32>
    %81 = math.tanh %80 : vector<1x32xf32>
    %82 = vector.extract_strided_slice %78 {offsets = [0, 32], sizes = [1, 32], strides = [1, 1]} : vector<1x64xf32> to vector<1x32xf32>
    %cst_23 = arith.constant dense<0.000000e+00> : vector<1x32xf32>
    %83 = tpu.matmul %81, %4, %cst_23 {dimension_numbers = #tpu.dot_dimension_numbers<[1], [0], [0], [1], [0, 0, 1, 1], [], []>} : vector<1x32xf32>, vector<32x32xf32>, vector<1x32xf32> -> vector<1x32xf32>
    %84 = vector.broadcast %77 : f32 to vector<1x32xf32>
    %85 = arith.mulf %84, %83 : vector<1x32xf32>
    %86 = arith.addf %82, %85 : vector<1x32xf32>
    %87 = vector.extract_strided_slice %10 {offsets = [5, 0], sizes = [1, 32], strides = [1, 1]} : vector<8x32xf32> to vector<1x32xf32>
    %88 = arith.addf %87, %86 : vector<1x32xf32>
    %89 = math.tanh %88 : vector<1x32xf32>
    %c6 = arith.constant 6 : index
    %90 = memref.load %arg0[%c6] : memref<8xf32, #tpu.memory_space<smem>>
    %cst_24 = arith.constant dense<0.000000e+00> : vector<1x64xf32>
    %91 = tpu.matmul %89, %2, %cst_24 {dimension_numbers = #tpu.dot_dimension_numbers<[1], [0], [0], [1], [0, 0, 1, 1], [], []>} : vector<1x32xf32>, vector<32x64xf32>, vector<1x64xf32> -> vector<1x64xf32>
    %92 = vector.extract_strided_slice %91 {offsets = [0, 0], sizes = [1, 32], strides = [1, 1]} : vector<1x64xf32> to vector<1x32xf32>
    %93 = arith.addf %92, %3 : vector<1x32xf32>
    %94 = math.tanh %93 : vector<1x32xf32>
    %95 = vector.extract_strided_slice %91 {offsets = [0, 32], sizes = [1, 32], strides = [1, 1]} : vector<1x64xf32> to vector<1x32xf32>
    %cst_25 = arith.constant dense<0.000000e+00> : vector<1x32xf32>
    %96 = tpu.matmul %94, %4, %cst_25 {dimension_numbers = #tpu.dot_dimension_numbers<[1], [0], [0], [1], [0, 0, 1, 1], [], []>} : vector<1x32xf32>, vector<32x32xf32>, vector<1x32xf32> -> vector<1x32xf32>
    %97 = vector.broadcast %90 : f32 to vector<1x32xf32>
    %98 = arith.mulf %97, %96 : vector<1x32xf32>
    %99 = arith.addf %95, %98 : vector<1x32xf32>
    %100 = vector.extract_strided_slice %10 {offsets = [6, 0], sizes = [1, 32], strides = [1, 1]} : vector<8x32xf32> to vector<1x32xf32>
    %101 = arith.addf %100, %99 : vector<1x32xf32>
    %102 = math.tanh %101 : vector<1x32xf32>
    %c7 = arith.constant 7 : index
    %103 = memref.load %arg0[%c7] : memref<8xf32, #tpu.memory_space<smem>>
    %cst_26 = arith.constant dense<0.000000e+00> : vector<1x64xf32>
    %104 = tpu.matmul %102, %2, %cst_26 {dimension_numbers = #tpu.dot_dimension_numbers<[1], [0], [0], [1], [0, 0, 1, 1], [], []>} : vector<1x32xf32>, vector<32x64xf32>, vector<1x64xf32> -> vector<1x64xf32>
    %105 = vector.extract_strided_slice %104 {offsets = [0, 0], sizes = [1, 32], strides = [1, 1]} : vector<1x64xf32> to vector<1x32xf32>
    %106 = arith.addf %105, %3 : vector<1x32xf32>
    %107 = math.tanh %106 : vector<1x32xf32>
    %108 = vector.extract_strided_slice %104 {offsets = [0, 32], sizes = [1, 32], strides = [1, 1]} : vector<1x64xf32> to vector<1x32xf32>
    %cst_27 = arith.constant dense<0.000000e+00> : vector<1x32xf32>
    %109 = tpu.matmul %107, %4, %cst_27 {dimension_numbers = #tpu.dot_dimension_numbers<[1], [0], [0], [1], [0, 0, 1, 1], [], []>} : vector<1x32xf32>, vector<32x32xf32>, vector<1x32xf32> -> vector<1x32xf32>
    %110 = vector.broadcast %103 : f32 to vector<1x32xf32>
    %111 = arith.mulf %110, %109 : vector<1x32xf32>
    %112 = arith.addf %108, %111 : vector<1x32xf32>
    %113 = vector.extract_strided_slice %10 {offsets = [7, 0], sizes = [1, 32], strides = [1, 1]} : vector<8x32xf32> to vector<1x32xf32>
    %114 = arith.addf %113, %112 : vector<1x32xf32>
    %115 = math.tanh %114 : vector<1x32xf32>
    %c0_28 = arith.constant 0 : index
    %c0_29 = arith.constant 0 : index
    %116 = vector.load %arg7[%c0_28, %c0_29] : memref<32x1xf32, #tpu.memory_space<vmem>>, vector<32x1xf32>
    %cst_30 = arith.constant dense<0.000000e+00> : vector<1x1xf32>
    %117 = tpu.matmul %115, %116, %cst_30 {dimension_numbers = #tpu.dot_dimension_numbers<[1], [0], [0], [1], [0, 0, 1, 1], [], []>} : vector<1x32xf32>, vector<32x1xf32>, vector<1x1xf32> -> vector<1x1xf32>
    %c0_31 = arith.constant 0 : index
    %c0_32 = arith.constant 0 : index
    %118 = vector.load %arg8[%c0_31, %c0_32] : memref<1x1xf32, #tpu.memory_space<vmem>>, vector<1x1xf32>
    %119 = arith.addf %117, %118 : vector<1x1xf32>
    %c0_33 = arith.constant 0 : index
    %c0_34 = arith.constant 0 : index
    %120 = vector.load %arg9[%c0_33, %c0_34] : memref<1x1xf32, #tpu.memory_space<vmem>>, vector<1x1xf32>
    tpu.vector_store %arg9[%c0_33, %c0_34], %119 {strides = array<i32>} : memref<1x1xf32, #tpu.memory_space<vmem>>, vector<1x1xf32>,
    return
  }
}

</mosaic_0001>

<llo_original>
// kernel: tpu_custom_call.1
$region0: #{tpu_custom_call.1}
  #allocation0 [shape = 'u32[]', space=smem, size = 0x4, offset = 0x4, fixed_abs, tag = 'smem constant byte address 0x4 - core index']
  #allocation1 [shape = 'u32[144,128]{1,0:T(1,128)}', space=vmem, size = 0x12000, scoped, tag = 'internal scratch']
  #allocation2 [shape = 'f32[1,1]{1,0:T(1,128)S(1)}', space=vmem, size = 0x200, scoped, tag = 'scoped memory for tpu_custom_call.1']
  %s0 = inlined_call_operand.hbm [shape: f32[8], index: 0, kind: input, shape index: {}]
  %s1 = inlined_call_operand.vmem [shape: f32[8,1], index: 1, kind: input, shape index: {}]
  %s2 = inlined_call_operand.hbm [shape: f32[1,32], index: 2, kind: input, shape index: {}]
  %s3 = inlined_call_operand.hbm [shape: f32[1,32], index: 3, kind: input, shape index: {}]
  %s4 = inlined_call_operand.vmem [shape: f32[32,64], index: 4, kind: input, shape index: {}]
  %s5 = inlined_call_operand.hbm [shape: f32[1,32], index: 5, kind: input, shape index: {}]
  %s6 = inlined_call_operand.vmem [shape: f32[32,32], index: 6, kind: input, shape index: {}]
  %s7 = inlined_call_operand.vmem [shape: f32[32,1], index: 7, kind: input, shape index: {}]
  %s8 = inlined_call_operand.<no memory space> [shape: f32[1,1], index: 8, kind: input, shape index: {}]
  %s9 = inlined_call_operand.hbm [shape: f32[1,1], index: 9, kind: output, shape index: {}]
  %s10 = sld [smem:[#allocation0]]
  $region62: #{tpu_custom_call.1} parent=0
    _
  %s12 = ssub.s32 1, %s10
  %s13 = scalar_select 0, %s12, %s10
  %v14 = vstv %s8
  %15 = vst [vmem:[#allocation2] sm:$0x1] %v14
  $region1: #{tpu_custom_call.1} parent=0
    #allocation3 [shape = 'u8[512]{0}', space=smem, size = 0x200, scoped, tag = 'input window, operand 0, single buffered']
    #allocation4 [shape = 's32[1]{0}', space=sflag, size = 0x4, scoped, tag = 'scoped memory for tpu_custom_call.1']
    #allocation5 [shape = 's32[1]{0}', space=sflag, size = 0x4, scoped, tag = 'scoped memory for tpu_custom_call.1']
    #allocation6 [shape = 's32[1]{0}', space=sflag, size = 0x4, scoped, tag = 'scoped memory for tpu_custom_call.1']
    #allocation7 [shape = 'u8[512]{0}', space=vmem, size = 0x400, scoped, tag = 'input window, operand 2, single buffered']
    #allocation8 [shape = 'u8[512]{0}', space=vmem, size = 0x400, scoped, tag = 'input window, operand 3, single buffered']
    #allocation9 [shape = 's32[1]{0}', space=sflag, size = 0x4, scoped, tag = 'scoped memory for tpu_custom_call.1']
    #allocation10 [shape = 'u8[512]{0}', space=vmem, size = 0x400, scoped, tag = 'input window, operand 5, single buffered']
    #allocation11 [shape = 'u8[512]{0}', space=vmem, size = 0x400, scoped, tag = 'output window, operand 0, single buffered']
    %16 = vsyncpa [#allocation6], 0
    %17 = vsyncpa [#allocation4], 0
    %18 = vsyncpa [#allocation9], 0
    %19 = vsyncpa [#allocation5], 0
    // Predicated region
    $region2: #{tpu_custom_call.1} parent=1 // pred_check
      _
    $region3: #{tpu_custom_call.1} parent=1 // pred_check_branch
      %21 = sbr.rel (0) target = $region5
    $region4: #{tpu_custom_call.1} parent=1 // pred_region
      %s23 = ssub.s32 16, 16
      %24 = vsyncadd [#allocation6], %s23
      %27 = dma.hbm_to_smem %s0, 16, [#allocation3], [#allocation6]
    $region5: #{tpu_custom_call.1} parent=1 // pred_fallthru
      _
    // Predicated region
    $region6: #{tpu_custom_call.1} parent=1 // pred_check
      _
    $region7: #{tpu_custom_call.1} parent=1 // pred_check_branch
      %29 = sbr.rel (0) target = $region9
    $region8: #{tpu_custom_call.1} parent=1 // pred_region
      _
    $region9: #{tpu_custom_call.1} parent=1 // pred_fallthru
      _
    // Predicated region
    $region10: #{tpu_custom_call.1} parent=1 // pred_check
      _
    $region11: #{tpu_custom_call.1} parent=1 // pred_check_branch
      %31 = sbr.rel (0) target = $region13
    $region12: #{tpu_custom_call.1} parent=1 // pred_region
      %s33 = ssub.s32 16, 16
      %34 = vsyncadd [#allocation4], %s33
      %s36 = sshll.u32 [#allocation7], 4
      %s37 = int_to_ptr.vmem [resolvable:$true] %s36
      %39 = dma.hbm_to_vmem [thread:$0]  %s2, 16, %s37, [#allocation4]
    $region13: #{tpu_custom_call.1} parent=1 // pred_fallthru
      _
    // Predicated region
    $region14: #{tpu_custom_call.1} parent=1 // pred_check
      _
    $region15: #{tpu_custom_call.1} parent=1 // pred_check_branch
      %41 = sbr.rel (0) target = $region17
    $region16: #{tpu_custom_call.1} parent=1 // pred_region
      %s43 = ssub.s32 16, 16
      %44 = vsyncadd [#allocation9], %s43
      %s46 = sshll.u32 [#allocation8], 4
      %s47 = int_to_ptr.vmem [resolvable:$true] %s46
      %49 = dma.hbm_to_vmem [thread:$0]  %s3, 16, %s47, [#allocation9]
    $region17: #{tpu_custom_call.1} parent=1 // pred_fallthru
      _
    // Predicated region
    $region18: #{tpu_custom_call.1} parent=1 // pred_check
      _
    $region19: #{tpu_custom_call.1} parent=1 // pred_check_branch
      %51 = sbr.rel (0) target = $region21
    $region20: #{tpu_custom_call.1} parent=1 // pred_region
      _
    $region21: #{tpu_custom_call.1} parent=1 // pred_fallthru
      _
    // Predicated region
    $region22: #{tpu_custom_call.1} parent=1 // pred_check
      _
    $region23: #{tpu_custom_call.1} parent=1 // pred_check_branch
      %53 = sbr.rel (0) target = $region25
    $region24: #{tpu_custom_call.1} parent=1 // pred_region
      %s55 = ssub.s32 16, 16
      %56 = vsyncadd [#allocation9], %s55
      %s58 = sshll.u32 [#allocation10], 4
      %s59 = int_to_ptr.vmem [resolvable:$true] %s58
      %61 = dma.hbm_to_vmem [thread:$0]  %s5, 16, %s59, [#allocation9]
    $region25: #{tpu_custom_call.1} parent=1 // pred_fallthru
      _
    // Predicated region
    $region26: #{tpu_custom_call.1} parent=1 // pred_check
      _
    $region27: #{tpu_custom_call.1} parent=1 // pred_check_branch
      %63 = sbr.rel (0) target = $region29
    $region28: #{tpu_custom_call.1} parent=1 // pred_region
      _
    $region29: #{tpu_custom_call.1} parent=1 // pred_fallthru
      _
    // Predicated region
    $region30: #{tpu_custom_call.1} parent=1 // pred_check
      _
    $region31: #{tpu_custom_call.1} parent=1 // pred_check_branch
      %65 = sbr.rel (0) target = $region33
    $region32: #{tpu_custom_call.1} parent=1 // pred_region
      _
    $region33: #{tpu_custom_call.1} parent=1 // pred_fallthru
      _
    // Predicated region
    $region34: #{tpu_custom_call.1} parent=1 // pred_check
      _
    $region35: #{tpu_custom_call.1} parent=1 // pred_check_branch
      %67 = sbr.rel (0) target = $region37
    $region36: #{tpu_custom_call.1} parent=1 // pred_region
      _
    $region37: #{tpu_custom_call.1} parent=1 // pred_fallthru
      _
    // Predicated region
    $region38: #{tpu_custom_call.1} parent=1 // pred_check
      _
    $region39: #{tpu_custom_call.1} parent=1 // pred_check_branch
      %69 = sbr.rel (0) target = $region41
    $region40: #{tpu_custom_call.1} parent=1 // pred_region
      %70 = dma.done [#allocation6], 16
    $region41: #{tpu_custom_call.1} parent=1 // pred_fallthru
      _
    // Predicated region
    $region42: #{tpu_custom_call.1} parent=1 // pred_check
      _
    $region43: #{tpu_custom_call.1} parent=1 // pred_check_branch
      %72 = sbr.rel (0) target = $region45
    $region44: #{tpu_custom_call.1} parent=1 // pred_region
      %73 = dma.done [#allocation4], 16
    $region45: #{tpu_custom_call.1} parent=1 // pred_fallthru
      _
    // Predicated region
    $region46: #{tpu_custom_call.1} parent=1 // pred_check
      _
    $region47: #{tpu_custom_call.1} parent=1 // pred_check_branch
      %75 = sbr.rel (0) target = $region49
    $region48: #{tpu_custom_call.1} parent=1 // pred_region
      %76 = dma.done [#allocation9], 16
    $region49: #{tpu_custom_call.1} parent=1 // pred_fallthru
      _
    // Predicated region
    $region50: #{tpu_custom_call.1} parent=1 // pred_check
      _
    $region51: #{tpu_custom_call.1} parent=1 // pred_check_branch
      %78 = sbr.rel (0) target = $region53
    $region52: #{tpu_custom_call.1} parent=1 // pred_region
      %79 = dma.done [#allocation9], 16
    $region53: #{tpu_custom_call.1} parent=1 // pred_fallthru
      _
    %80 = sfence
    %v81 = vld [vmem:[#allocation7] sm:$0x1]
    %v82 = vld [vmem:[#allocation8] sm:$0x1]
    %v83 = vld [vmem:[%s4] sm:$0xff]
    %v84 = vld [vmem:[%s4 + $0x8] sm:$0xff]
    %v85 = vld [vmem:[%s4 + $0x10] sm:$0xff]
    %v86 = vld [vmem:[%s4 + $0x18] sm:$0xff]
    %v87 = vld [vmem:[#allocation10] sm:$0x1]
    %v88 = vld [vmem:[%s6] sm:$0xff]
    %v89 = vld [vmem:[%s6 + $0x8] sm:$0xff]
    %v90 = vld [vmem:[%s6 + $0x10] sm:$0xff]
    %v91 = vld [vmem:[%s6 + $0x18] sm:$0xff]
    %v92 = vld [vmem:[%s1] sm:$0xff]
    %94 = vset.pattern.permute.xlu0 0
    %95 = vperm.xlu0 %94, %v92
    %v96 = vpop.permute.xlu0 %95
    %v99 = vlaneseq
    %v100 = vshrl.u32 %v99, 7
    %v101 = vsub.s32 0, %v100
    %v102 = vrot.slane %v81, %v101
    %v104 = vmul.f32 %v96, %v102
    %v106 = vlaneseq
    %v107 = vshrl.u32 %v106, 7
    %v108 = vsub.s32 0, %v107
    %v109 = vrot.slane %v82, %v108
    %v111 = vadd.f32 %v104, %v109
    %s112 = sld [smem:[#allocation3]]
    %vm113 = vcmask 261120
    %v115 = vsel %vm113, 0.0, 0
    %117 = vmatprep.subr.mxu0 0.0
    %118 = vmatpush1.msra.mxu0 %v83
    %119 = vmatprep.subr.mxu0 0.0
    %120 = vmatpush1.msra.mxu0 %v84
    %121 = vmatprep.subr.mxu0 0.0
    %122 = vmatpush1.msra.mxu0 %v85
    %123 = vmatprep.subr.mxu0 0.0
    %124 = vmatpush1.msra.mxu0 %v86
    %125 = vmatprep.subr.mxu0 0.0
    %126 = vmatpush1.msra.mxu0 0.0
    %127 = vmatprep.subr.mxu0 0.0
    %128 = vmatpush1.msra.mxu0 0.0
    %129 = vmatprep.subr.mxu0 0.0
    %130 = vmatpush1.msra.mxu0 0.0
    %131 = vmatprep.subr.mxu0 0.0
    %132 = vmatpush1.msra.mxu0 0.0
    %133 = vmatprep.subr.mxu0 0.0
    %134 = vmatpush1.msra.mxu0 0.0
    %135 = vmatprep.subr.mxu0 0.0
    %136 = vmatpush1.msra.mxu0 0.0
    %137 = vmatprep.subr.mxu0 0.0
    %138 = vmatpush1.msra.mxu0 0.0
    %139 = vmatprep.subr.mxu0 0.0
    %140 = vmatpush1.msra.mxu0 0.0
    %141 = vmatprep.subr.mxu0 0.0
    %142 = vmatpush1.msra.mxu0 0.0
    %143 = vmatprep.subr.mxu0 0.0
    %144 = vmatpush1.msra.mxu0 0.0
    %145 = vmatprep.subr.mxu0 0.0
    %146 = vmatpush1.msra.mxu0 0.0
    %147 = vmatprep.subr.mxu0 0.0
    %148 = vmatpush1.msra.mxu0 0.0
    %149 = vmatprep.subr.mxu0 0.0
    %150 = vmatpush1.msra.mxu0 0.0
    %151 = vmatprep.subr.mxu0 0.0
    %152 = vmatpush1.msra.mxu0 0.0
    %153 = vmatprep.subr.mxu0 0.0
    %154 = vmatpush1.msra.mxu0 0.0
    %155 = vmatprep.subr.mxu0 0.0
    %156 = vmatpush1.msra.mxu0 0.0
    %157 = vmatprep.subr.mxu0 0.0
    %158 = vmatpush1.msra.mxu0 0.0
    %159 = vmatprep.subr.mxu0 0.0
    %160 = vmatpush1.msra.mxu0 0.0
    %161 = vmatprep.subr.mxu0 0.0
    %162 = vmatpush1.msra.mxu0 0.0
    %163 = vmatprep.subr.mxu0 0.0
    %164 = vmatpush1.msra.mxu0 0.0
    %165 = vmatprep.subr.mxu0 0.0
    %166 = vmatpush1.msra.mxu0 0.0
    %167 = vmatprep.subr.mxu0 0.0
    %168 = vmatpush1.msra.mxu0 0.0
    %169 = vmatprep.subr.mxu0 0.0
    %170 = vmatpush1.msra.mxu0 0.0
    %171 = vmatprep.subr.mxu0 0.0
    %172 = vmatpush1.msra.mxu0 0.0
    %173 = vmatprep.subr.mxu0 0.0
    %174 = vmatpush1.msra.mxu0 0.0
    %175 = vmatprep.subr.mxu0 0.0
    %176 = vmatpush1.msra.mxu0 0.0
    %177 = vmatprep.subr.mxu0 0.0
    %178 = vmatpush1.msra.mxu0 0.0
    %179 = vmatprep.subr.mxu0 0.0
    %180 = vmatpush1.msra.mxu0 0.0
    %181 = vmatprep.mubr.f32.mxu0 0.0
    %182 = vmatmul.mubr.f32.gmra.mrb[0].mxu0 %v115
    %v183 = vpop.f32.mrb[0].mxu0
    %v184 = vadd.f32 0.0, %v183
    %v185 = vpop.f32.mrb[0].mxu0
    %186 = vdwg.mxu0
    %v187 = vadd.f32 %v184, %v87
    %v188 = vtanh.pop %v187
    %v190 = vsel %vm113, %v188, 0
    %192 = vmatprep.subr.mxu0 0.0
    %193 = vmatpush1.msra.mxu0 %v88
    %194 = vmatprep.subr.mxu0 0.0
    %195 = vmatpush1.msra.mxu0 %v89
    %196 = vmatprep.subr.mxu0 0.0
    %197 = vmatpush1.msra.mxu0 %v90
    %198 = vmatprep.subr.mxu0 0.0
    %199 = vmatpush1.msra.mxu0 %v91
    %200 = vmatprep.subr.mxu0 0.0
    %201 = vmatpush1.msra.mxu0 0.0
    %202 = vmatprep.subr.mxu0 0.0
    %203 = vmatpush1.msra.mxu0 0.0
    %204 = vmatprep.subr.mxu0 0.0
    %205 = vmatpush1.msra.mxu0 0.0
    %206 = vmatprep.subr.mxu0 0.0
    %207 = vmatpush1.msra.mxu0 0.0
    %208 = vmatprep.subr.mxu0 0.0
    %209 = vmatpush1.msra.mxu0 0.0
    %210 = vmatprep.subr.mxu0 0.0
    %211 = vmatpush1.msra.mxu0 0.0
    %212 = vmatprep.subr.mxu0 0.0
    %213 = vmatpush1.msra.mxu0 0.0
    %214 = vmatprep.subr.mxu0 0.0
    %215 = vmatpush1.msra.mxu0 0.0
    %216 = vmatprep.subr.mxu0 0.0
    %217 = vmatpush1.msra.mxu0 0.0
    %218 = vmatprep.subr.mxu0 0.0
    %219 = vmatpush1.msra.mxu0 0.0
    %220 = vmatprep.subr.mxu0 0.0
    %221 = vmatpush1.msra.mxu0 0.0
    %222 = vmatprep.subr.mxu0 0.0
    %223 = vmatpush1.msra.mxu0 0.0
    %224 = vmatprep.subr.mxu0 0.0
    %225 = vmatpush1.msra.mxu0 0.0
    %226 = vmatprep.subr.mxu0 0.0
    %227 = vmatpush1.msra.mxu0 0.0
    %228 = vmatprep.subr.mxu0 0.0
    %229 = vmatpush1.msra.mxu0 0.0
    %230 = vmatprep.subr.mxu0 0.0
    %231 = vmatpush1.msra.mxu0 0.0
    %232 = vmatprep.subr.mxu0 0.0
    %233 = vmatpush1.msra.mxu0 0.0
    %234 = vmatprep.subr.mxu0 0.0
    %235 = vmatpush1.msra.mxu0 0.0
    %236 = vmatprep.subr.mxu0 0.0
    %237 = vmatpush1.msra.mxu0 0.0
    %238 = vmatprep.subr.mxu0 0.0
    %239 = vmatpush1.msra.mxu0 0.0
    %240 = vmatprep.subr.mxu0 0.0
    %241 = vmatpush1.msra.mxu0 0.0
    %242 = vmatprep.subr.mxu0 0.0
    %243 = vmatpush1.msra.mxu0 0.0
    %244 = vmatprep.subr.mxu0 0.0
    %245 = vmatpush1.msra.mxu0 0.0
    %246 = vmatprep.subr.mxu0 0.0
    %247 = vmatpush1.msra.mxu0 0.0
    %248 = vmatprep.subr.mxu0 0.0
    %249 = vmatpush1.msra.mxu0 0.0
    %250 = vmatprep.subr.mxu0 0.0
    %251 = vmatpush1.msra.mxu0 0.0
    %252 = vmatprep.subr.mxu0 0.0
    %253 = vmatpush1.msra.mxu0 0.0
    %254 = vmatprep.subr.mxu0 0.0
    %255 = vmatpush1.msra.mxu0 0.0
    %256 = vmatprep.mubr.f32.mxu0 0.0
    %257 = vmatmul.mubr.f32.gmra.mrb[0].mxu0 %v190
    %v258 = vpop.f32.mrb[0].mxu0
    %v259 = vadd.f32 0.0, %v258
    %v260 = vpop.f32.mrb[0].mxu0
    %261 = vdwg.mxu0
    %v262 = vstv %s112
    %v263 = vmul.f32 %v262, %v259
    %265 = vrot.lane.b32.xlu0 %v263, 32
    %v266 = vpop.permute.xlu0 %265
    %v268 = vadd.f32 %v184, %v266
    %270 = vrot.lane.b32.xlu0 %v268, 96
    %v271 = vpop.permute.xlu0 %270
    %v273 = vadd.f32 %v111, %v271
    %v274 = vtanh.pop %v273
    %s275 = sld [smem:[#allocation3 + $0x1]]
    %v277 = vsel %vm113, %v274, 0
    %279 = vmatprep.subr.mxu0 0.0
    %280 = vmatpush1.msra.mxu0 %v83
    %281 = vmatprep.subr.mxu0 0.0
    %282 = vmatpush1.msra.mxu0 %v84
    %283 = vmatprep.subr.mxu0 0.0
    %284 = vmatpush1.msra.mxu0 %v85
    %285 = vmatprep.subr.mxu0 0.0
    %286 = vmatpush1.msra.mxu0 %v86
    %287 = vmatprep.subr.mxu0 0.0
    %288 = vmatpush1.msra.mxu0 0.0
    %289 = vmatprep.subr.mxu0 0.0
    %290 = vmatpush1.msra.mxu0 0.0
    %291 = vmatprep.subr.mxu0 0.0
    %292 = vmatpush1.msra.mxu0 0.0
    %293 = vmatprep.subr.mxu0 0.0
    %294 = vmatpush1.msra.mxu0 0.0
    %295 = vmatprep.subr.mxu0 0.0
    %296 = vmatpush1.msra.mxu0 0.0
    %297 = vmatprep.subr.mxu0 0.0
    %298 = vmatpush1.msra.mxu0 0.0
    %299 = vmatprep.subr.mxu0 0.0
    %300 = vmatpush1.msra.mxu0 0.0
    %301 = vmatprep.subr.mxu0 0.0
    %302 = vmatpush1.msra.mxu0 0.0
    %303 = vmatprep.subr.mxu0 0.0
    %304 = vmatpush1.msra.mxu0 0.0
    %305 = vmatprep.subr.mxu0 0.0
    %306 = vmatpush1.msra.mxu0 0.0
    %307 = vmatprep.subr.mxu0 0.0
    %308 = vmatpush1.msra.mxu0 0.0
    %309 = vmatprep.subr.mxu0 0.0
    %310 = vmatpush1.msra.mxu0 0.0
    %311 = vmatprep.subr.mxu0 0.0
    %312 = vmatpush1.msra.mxu0 0.0
    %313 = vmatprep.subr.mxu0 0.0
    %314 = vmatpush1.msra.mxu0 0.0
    %315 = vmatprep.subr.mxu0 0.0
    %316 = vmatpush1.msra.mxu0 0.0
    %317 = vmatprep.subr.mxu0 0.0
    %318 = vmatpush1.msra.mxu0 0.0
    %319 = vmatprep.subr.mxu0 0.0
    %320 = vmatpush1.msra.mxu0 0.0
    %321 = vmatprep.subr.mxu0 0.0
    %322 = vmatpush1.msra.mxu0 0.0
    %323 = vmatprep.subr.mxu0 0.0
    %324 = vmatpush1.msra.mxu0 0.0
    %325 = vmatprep.subr.mxu0 0.0
    %326 = vmatpush1.msra.mxu0 0.0
    %327 = vmatprep.subr.mxu0 0.0
    %328 = vmatpush1.msra.mxu0 0.0
    %329 = vmatprep.subr.mxu0 0.0
    %330 = vmatpush1.msra.mxu0 0.0
    %331 = vmatprep.subr.mxu0 0.0
    %332 = vmatpush1.msra.mxu0 0.0
    %333 = vmatprep.subr.mxu0 0.0
    %334 = vmatpush1.msra.mxu0 0.0
    %335 = vmatprep.subr.mxu0 0.0
    %336 = vmatpush1.msra.mxu0 0.0
    %337 = vmatprep.subr.mxu0 0.0
    %338 = vmatpush1.msra.mxu0 0.0
    %339 = vmatprep.subr.mxu0 0.0
    %340 = vmatpush1.msra.mxu0 0.0
    %341 = vmatprep.subr.mxu0 0.0
    %342 = vmatpush1.msra.mxu0 0.0
    %343 = vmatprep.mubr.f32.mxu0 0.0
    %344 = vmatmul.mubr.f32.gmra.mrb[0].mxu0 %v277
    %v345 = vpop.f32.mrb[0].mxu0
    %v346 = vadd.f32 0.0, %v345
    %v347 = vpop.f32.mrb[0].mxu0
    %348 = vdwg.mxu0
    %v349 = vadd.f32 %v346, %v87
    %v350 = vtanh.pop %v349
    %v352 = vsel %vm113, %v350, 0
    %354 = vmatprep.subr.mxu0 0.0
    %355 = vmatpush1.msra.mxu0 %v88
    %356 = vmatprep.subr.mxu0 0.0
    %357 = vmatpush1.msra.mxu0 %v89
    %358 = vmatprep.subr.mxu0 0.0
    %359 = vmatpush1.msra.mxu0 %v90
    %360 = vmatprep.subr.mxu0 0.0
    %361 = vmatpush1.msra.mxu0 %v91
    %362 = vmatprep.subr.mxu0 0.0
    %363 = vmatpush1.msra.mxu0 0.0
    %364 = vmatprep.subr.mxu0 0.0
    %365 = vmatpush1.msra.mxu0 0.0
    %366 = vmatprep.subr.mxu0 0.0
    %367 = vmatpush1.msra.mxu0 0.0
    %368 = vmatprep.subr.mxu0 0.0
    %369 = vmatpush1.msra.mxu0 0.0
    %370 = vmatprep.subr.mxu0 0.0
    %371 = vmatpush1.msra.mxu0 0.0
    %372 = vmatprep.subr.mxu0 0.0
    %373 = vmatpush1.msra.mxu0 0.0
    %374 = vmatprep.subr.mxu0 0.0
    %375 = vmatpush1.msra.mxu0 0.0
    %376 = vmatprep.subr.mxu0 0.0
    %377 = vmatpush1.msra.mxu0 0.0
    %378 = vmatprep.subr.mxu0 0.0
    %379 = vmatpush1.msra.mxu0 0.0
    %380 = vmatprep.subr.mxu0 0.0
    %381 = vmatpush1.msra.mxu0 0.0
    %382 = vmatprep.subr.mxu0 0.0
    %383 = vmatpush1.msra.mxu0 0.0
    %384 = vmatprep.subr.mxu0 0.0
    %385 = vmatpush1.msra.mxu0 0.0
    %386 = vmatprep.subr.mxu0 0.0
    %387 = vmatpush1.msra.mxu0 0.0
    %388 = vmatprep.subr.mxu0 0.0
    %389 = vmatpush1.msra.mxu0 0.0
    %390 = vmatprep.subr.mxu0 0.0
    %391 = vmatpush1.msra.mxu0 0.0
    %392 = vmatprep.subr.mxu0 0.0
    %393 = vmatpush1.msra.mxu0 0.0
    %394 = vmatprep.subr.mxu0 0.0
    %395 = vmatpush1.msra.mxu0 0.0
    %396 = vmatprep.subr.mxu0 0.0
    %397 = vmatpush1.msra.mxu0 0.0
    %398 = vmatprep.subr.mxu0 0.0
    %399 = vmatpush1.msra.mxu0 0.0
    %400 = vmatprep.subr.mxu0 0.0
    %401 = vmatpush1.msra.mxu0 0.0
    %402 = vmatprep.subr.mxu0 0.0
    %403 = vmatpush1.msra.mxu0 0.0
    %404 = vmatprep.subr.mxu0 0.0
    %405 = vmatpush1.msra.mxu0 0.0
    %406 = vmatprep.subr.mxu0 0.0
    %407 = vmatpush1.msra.mxu0 0.0
    %408 = vmatprep.subr.mxu0 0.0
    %409 = vmatpush1.msra.mxu0 0.0
    %410 = vmatprep.subr.mxu0 0.0
    %411 = vmatpush1.msra.mxu0 0.0
    %412 = vmatprep.subr.mxu0 0.0
    %413 = vmatpush1.msra.mxu0 0.0
    %414 = vmatprep.subr.mxu0 0.0
    %415 = vmatpush1.msra.mxu0 0.0
    %416 = vmatprep.subr.mxu0 0.0
    %417 = vmatpush1.msra.mxu0 0.0
    %418 = vmatprep.mubr.f32.mxu0 0.0
    %419 = vmatmul.mubr.f32.gmra.mrb[0].mxu0 %v352
    %v420 = vpop.f32.mrb[0].mxu0
    %v421 = vadd.f32 0.0, %v420
    %v422 = vpop.f32.mrb[0].mxu0
    %423 = vdwg.mxu0
    %v424 = vstv %s275
    %v425 = vmul.f32 %v424, %v421
    %427 = vrot.lane.b32.xlu0 %v425, 32
    %v428 = vpop.permute.xlu0 %427
    %v430 = vadd.f32 %v346, %v428
    %v432 = vrot.slane %v430, 7
    %433 = vrot.lane.b32.xlu0 %v432, 96
    %v434 = vpop.permute.xlu0 %433
    %v436 = vadd.f32 %v111, %v434
    %v437 = vtanh.pop %v436
    %s438 = sld [smem:[#allocation3 + $0x2]]
    %v440 = vrot.slane %v437, 1
    %v441 = vsel %vm113, %v440, 0
    %443 = vmatprep.subr.mxu0 0.0
    %444 = vmatpush1.msra.mxu0 %v83
    %445 = vmatprep.subr.mxu0 0.0
    %446 = vmatpush1.msra.mxu0 %v84
    %447 = vmatprep.subr.mxu0 0.0
    %448 = vmatpush1.msra.mxu0 %v85
    %449 = vmatprep.subr.mxu0 0.0
    %450 = vmatpush1.msra.mxu0 %v86
    %451 = vmatprep.subr.mxu0 0.0
    %452 = vmatpush1.msra.mxu0 0.0
    %453 = vmatprep.subr.mxu0 0.0
    %454 = vmatpush1.msra.mxu0 0.0
    %455 = vmatprep.subr.mxu0 0.0
    %456 = vmatpush1.msra.mxu0 0.0
    %457 = vmatprep.subr.mxu0 0.0
    %458 = vmatpush1.msra.mxu0 0.0
    %459 = vmatprep.subr.mxu0 0.0
    %460 = vmatpush1.msra.mxu0 0.0
    %461 = vmatprep.subr.mxu0 0.0
    %462 = vmatpush1.msra.mxu0 0.0
    %463 = vmatprep.subr.mxu0 0.0
    %464 = vmatpush1.msra.mxu0 0.0
    %465 = vmatprep.subr.mxu0 0.0
    %466 = vmatpush1.msra.mxu0 0.0
    %467 = vmatprep.subr.mxu0 0.0
    %468 = vmatpush1.msra.mxu0 0.0
    %469 = vmatprep.subr.mxu0 0.0
    %470 = vmatpush1.msra.mxu0 0.0
    %471 = vmatprep.subr.mxu0 0.0
    %472 = vmatpush1.msra.mxu0 0.0
    %473 = vmatprep.subr.mxu0 0.0
    %474 = vmatpush1.msra.mxu0 0.0
    %475 = vmatprep.subr.mxu0 0.0
    %476 = vmatpush1.msra.mxu0 0.0
    %477 = vmatprep.subr.mxu0 0.0
    %478 = vmatpush1.msra.mxu0 0.0
    %479 = vmatprep.subr.mxu0 0.0
    %480 = vmatpush1.msra.mxu0 0.0
    %481 = vmatprep.subr.mxu0 0.0
    %482 = vmatpush1.msra.mxu0 0.0
    %483 = vmatprep.subr.mxu0 0.0
    %484 = vmatpush1.msra.mxu0 0.0
    %485 = vmatprep.subr.mxu0 0.0
    %486 = vmatpush1.msra.mxu0 0.0
    %487 = vmatprep.subr.mxu0 0.0
    %488 = vmatpush1.msra.mxu0 0.0
    %489 = vmatprep.subr.mxu0 0.0
    %490 = vmatpush1.msra.mxu0 0.0
    %491 = vmatprep.subr.mxu0 0.0
    %492 = vmatpush1.msra.mxu0 0.0
    %493 = vmatprep.subr.mxu0 0.0
    %494 = vmatpush1.msra.mxu0 0.0
    %495 = vmatprep.subr.mxu0 0.0
    %496 = vmatpush1.msra.mxu0 0.0
    %497 = vmatprep.subr.mxu0 0.0
    %498 = vmatpush1.msra.mxu0 0.0
    %499 = vmatprep.subr.mxu0 0.0
    %500 = vmatpush1.msra.mxu0 0.0
    %501 = vmatprep.subr.mxu0 0.0
    %502 = vmatpush1.msra.mxu0 0.0
    %503 = vmatprep.subr.mxu0 0.0
    %504 = vmatpush1.msra.mxu0 0.0
    %505 = vmatprep.subr.mxu0 0.0
    %506 = vmatpush1.msra.mxu0 0.0
    %507 = vmatprep.mubr.f32.mxu0 0.0
    %508 = vmatmul.mubr.f32.gmra.mrb[0].mxu0 %v441
    %v509 = vpop.f32.mrb[0].mxu0
    %v510 = vadd.f32 0.0, %v509
    %v511 = vpop.f32.mrb[0].mxu0
    %512 = vdwg.mxu0
    %v513 = vadd.f32 %v510, %v87
    %v514 = vtanh.pop %v513
    %v516 = vsel %vm113, %v514, 0
    %518 = vmatprep.subr.mxu0 0.0
    %519 = vmatpush1.msra.mxu0 %v88
    %520 = vmatprep.subr.mxu0 0.0
    %521 = vmatpush1.msra.mxu0 %v89
    %522 = vmatprep.subr.mxu0 0.0
    %523 = vmatpush1.msra.mxu0 %v90
    %524 = vmatprep.subr.mxu0 0.0
    %525 = vmatpush1.msra.mxu0 %v91
    %526 = vmatprep.subr.mxu0 0.0
    %527 = vmatpush1.msra.mxu0 0.0
    %528 = vmatprep.subr.mxu0 0.0
    %529 = vmatpush1.msra.mxu0 0.0
    %530 = vmatprep.subr.mxu0 0.0
    %531 = vmatpush1.msra.mxu0 0.0
    %532 = vmatprep.subr.mxu0 0.0
    %533 = vmatpush1.msra.mxu0 0.0
    %534 = vmatprep.subr.mxu0 0.0
    %535 = vmatpush1.msra.mxu0 0.0
    %536 = vmatprep.subr.mxu0 0.0
    %537 = vmatpush1.msra.mxu0 0.0
    %538 = vmatprep.subr.mxu0 0.0
    %539 = vmatpush1.msra.mxu0 0.0
    %540 = vmatprep.subr.mxu0 0.0
    %541 = vmatpush1.msra.mxu0 0.0
    %542 = vmatprep.subr.mxu0 0.0
    %543 = vmatpush1.msra.mxu0 0.0
    %544 = vmatprep.subr.mxu0 0.0
    %545 = vmatpush1.msra.mxu0 0.0
    %546 = vmatprep.subr.mxu0 0.0
    %547 = vmatpush1.msra.mxu0 0.0
    %548 = vmatprep.subr.mxu0 0.0
    %549 = vmatpush1.msra.mxu0 0.0
    %550 = vmatprep.subr.mxu0 0.0
    %551 = vmatpush1.msra.mxu0 0.0
    %552 = vmatprep.subr.mxu0 0.0
    %553 = vmatpush1.msra.mxu0 0.0
    %554 = vmatprep.subr.mxu0 0.0
    %555 = vmatpush1.msra.mxu0 0.0
    %556 = vmatprep.subr.mxu0 0.0
    %557 = vmatpush1.msra.mxu0 0.0
    %558 = vmatprep.subr.mxu0 0.0
    %559 = vmatpush1.msra.mxu0 0.0
    %560 = vmatprep.subr.mxu0 0.0
    %561 = vmatpush1.msra.mxu0 0.0
    %562 = vmatprep.subr.mxu0 0.0
    %563 = vmatpush1.msra.mxu0 0.0
    %564 = vmatprep.subr.mxu0 0.0
    %565 = vmatpush1.msra.mxu0 0.0
    %566 = vmatprep.subr.mxu0 0.0
    %567 = vmatpush1.msra.mxu0 0.0
    %568 = vmatprep.subr.mxu0 0.0
    %569 = vmatpush1.msra.mxu0 0.0
    %570 = vmatprep.subr.mxu0 0.0
    %571 = vmatpush1.msra.mxu0 0.0
    %572 = vmatprep.subr.mxu0 0.0
    %573 = vmatpush1.msra.mxu0 0.0
    %574 = vmatprep.subr.mxu0 0.0
    %575 = vmatpush1.msra.mxu0 0.0
    %576 = vmatprep.subr.mxu0 0.0
    %577 = vmatpush1.msra.mxu0 0.0
    %578 = vmatprep.subr.mxu0 0.0
    %579 = vmatpush1.msra.mxu0 0.0
    %580 = vmatprep.subr.mxu0 0.0
    %581 = vmatpush1.msra.mxu0 0.0
    %582 = vmatprep.mubr.f32.mxu0 0.0
    %583 = vmatmul.mubr.f32.gmra.mrb[0].mxu0 %v516
    %v584 = vpop.f32.mrb[0].mxu0
    %v585 = vadd.f32 0.0, %v584
    %v586 = vpop.f32.mrb[0].mxu0
    %587 = vdwg.mxu0
    %v588 = vstv %s438
    %v589 = vmul.f32 %v588, %v585
    %591 = vrot.lane.b32.xlu0 %v589, 32
    %v592 = vpop.permute.xlu0 %591
    %v594 = vadd.f32 %v510, %v592
    %v596 = vrot.slane %v594, 6
    %597 = vrot.lane.b32.xlu0 %v596, 96
    %v598 = vpop.permute.xlu0 %597
    %v600 = vadd.f32 %v111, %v598
    %v601 = vtanh.pop %v600
    %s602 = sld [smem:[#allocation3 + $0x3]]
    %v604 = vrot.slane %v601, 2
    %v605 = vsel %vm113, %v604, 0
    %607 = vmatprep.subr.mxu0 0.0
    %608 = vmatpush1.msra.mxu0 %v83
    %609 = vmatprep.subr.mxu0 0.0
    %610 = vmatpush1.msra.mxu0 %v84
    %611 = vmatprep.subr.mxu0 0.0
    %612 = vmatpush1.msra.mxu0 %v85
    %613 = vmatprep.subr.mxu0 0.0
    %614 = vmatpush1.msra.mxu0 %v86
    %615 = vmatprep.subr.mxu0 0.0
    %616 = vmatpush1.msra.mxu0 0.0
    %617 = vmatprep.subr.mxu0 0.0
    %618 = vmatpush1.msra.mxu0 0.0
    %619 = vmatprep.subr.mxu0 0.0
    %620 = vmatpush1.msra.mxu0 0.0
    %621 = vmatprep.subr.mxu0 0.0
    %622 = vmatpush1.msra.mxu0 0.0
    %623 = vmatprep.subr.mxu0 0.0
    %624 = vmatpush1.msra.mxu0 0.0
    %625 = vmatprep.subr.mxu0 0.0
    %626 = vmatpush1.msra.mxu0 0.0
    %627 = vmatprep.subr.mxu0 0.0
    %628 = vmatpush1.msra.mxu0 0.0
    %629 = vmatprep.subr.mxu0 0.0
    %630 = vmatpush1.msra.mxu0 0.0
    %631 = vmatprep.subr.mxu0 0.0
    %632 = vmatpush1.msra.mxu0 0.0
    %633 = vmatprep.subr.mxu0 0.0
    %634 = vmatpush1.msra.mxu0 0.0
    %635 = vmatprep.subr.mxu0 0.0
    %636 = vmatpush1.msra.mxu0 0.0
    %637 = vmatprep.subr.mxu0 0.0
    %638 = vmatpush1.msra.mxu0 0.0
    %639 = vmatprep.subr.mxu0 0.0
    %640 = vmatpush1.msra.mxu0 0.0
    %641 = vmatprep.subr.mxu0 0.0
    %642 = vmatpush1.msra.mxu0 0.0
    %643 = vmatprep.subr.mxu0 0.0
    %644 = vmatpush1.msra.mxu0 0.0
    %645 = vmatprep.subr.mxu0 0.0
    %646 = vmatpush1.msra.mxu0 0.0
    %647 = vmatprep.subr.mxu0 0.0
    %648 = vmatpush1.msra.mxu0 0.0
    %649 = vmatprep.subr.mxu0 0.0
    %650 = vmatpush1.msra.mxu0 0.0
    %651 = vmatprep.subr.mxu0 0.0
    %652 = vmatpush1.msra.mxu0 0.0
    %653 = vmatprep.subr.mxu0 0.0
    %654 = vmatpush1.msra.mxu0 0.0
    %655 = vmatprep.subr.mxu0 0.0
    %656 = vmatpush1.msra.mxu0 0.0
    %657 = vmatprep.subr.mxu0 0.0
    %658 = vmatpush1.msra.mxu0 0.0
    %659 = vmatprep.subr.mxu0 0.0
    %660 = vmatpush1.msra.mxu0 0.0
    %661 = vmatprep.subr.mxu0 0.0
    %662 = vmatpush1.msra.mxu0 0.0
    %663 = vmatprep.subr.mxu0 0.0
    %664 = vmatpush1.msra.mxu0 0.0
    %665 = vmatprep.subr.mxu0 0.0
    %666 = vmatpush1.msra.mxu0 0.0
    %667 = vmatprep.subr.mxu0 0.0
    %668 = vmatpush1.msra.mxu0 0.0
    %669 = vmatprep.subr.mxu0 0.0
    %670 = vmatpush1.msra.mxu0 0.0
    %671 = vmatprep.mubr.f32.mxu0 0.0
    %672 = vmatmul.mubr.f32.gmra.mrb[0].mxu0 %v605
    %v673 = vpop.f32.mrb[0].mxu0
    %v674 = vadd.f32 0.0, %v673
    %v675 = vpop.f32.mrb[0].mxu0
    %676 = vdwg.mxu0
    %v677 = vadd.f32 %v674, %v87
    %v678 = vtanh.pop %v677
    %v680 = vsel %vm113, %v678, 0
    %682 = vmatprep.subr.mxu0 0.0
    %683 = vmatpush1.msra.mxu0 %v88
    %684 = vmatprep.subr.mxu0 0.0
    %685 = vmatpush1.msra.mxu0 %v89
    %686 = vmatprep.subr.mxu0 0.0
    %687 = vmatpush1.msra.mxu0 %v90
    %688 = vmatprep.subr.mxu0 0.0
    %689 = vmatpush1.msra.mxu0 %v91
    %690 = vmatprep.subr.mxu0 0.0
    %691 = vmatpush1.msra.mxu0 0.0
    %692 = vmatprep.subr.mxu0 0.0
    %693 = vmatpush1.msra.mxu0 0.0
    %694 = vmatprep.subr.mxu0 0.0
    %695 = vmatpush1.msra.mxu0 0.0
    %696 = vmatprep.subr.mxu0 0.0
    %697 = vmatpush1.msra.mxu0 0.0
    %698 = vmatprep.subr.mxu0 0.0
    %699 = vmatpush1.msra.mxu0 0.0
    %700 = vmatprep.subr.mxu0 0.0
    %701 = vmatpush1.msra.mxu0 0.0
    %702 = vmatprep.subr.mxu0 0.0
    %703 = vmatpush1.msra.mxu0 0.0
    %704 = vmatprep.subr.mxu0 0.0
    %705 = vmatpush1.msra.mxu0 0.0
    %706 = vmatprep.subr.mxu0 0.0
    %707 = vmatpush1.msra.mxu0 0.0
    %708 = vmatprep.subr.mxu0 0.0
    %709 = vmatpush1.msra.mxu0 0.0
    %710 = vmatprep.subr.mxu0 0.0
    %711 = vmatpush1.msra.mxu0 0.0
    %712 = vmatprep.subr.mxu0 0.0
    %713 = vmatpush1.msra.mxu0 0.0
    %714 = vmatprep.subr.mxu0 0.0
    %715 = vmatpush1.msra.mxu0 0.0
    %716 = vmatprep.subr.mxu0 0.0
    %717 = vmatpush1.msra.mxu0 0.0
    %718 = vmatprep.subr.mxu0 0.0
    %719 = vmatpush1.msra.mxu0 0.0
    %720 = vmatprep.subr.mxu0 0.0
    %721 = vmatpush1.msra.mxu0 0.0
    %722 = vmatprep.subr.mxu0 0.0
    %723 = vmatpush1.msra.mxu0 0.0
    %724 = vmatprep.subr.mxu0 0.0
    %725 = vmatpush1.msra.mxu0 0.0
    %726 = vmatprep.subr.mxu0 0.0
    %727 = vmatpush1.msra.mxu0 0.0
    %728 = vmatprep.subr.mxu0 0.0
    %729 = vmatpush1.msra.mxu0 0.0
    %730 = vmatprep.subr.mxu0 0.0
    %731 = vmatpush1.msra.mxu0 0.0
    %732 = vmatprep.subr.mxu0 0.0
    %733 = vmatpush1.msra.mxu0 0.0
    %734 = vmatprep.subr.mxu0 0.0
    %735 = vmatpush1.msra.mxu0 0.0
    %736 = vmatprep.subr.mxu0 0.0
    %737 = vmatpush1.msra.mxu0 0.0
    %738 = vmatprep.subr.mxu0 0.0
    %739 = vmatpush1.msra.mxu0 0.0
    %740 = vmatprep.subr.mxu0 0.0
    %741 = vmatpush1.msra.mxu0 0.0
    %742 = vmatprep.subr.mxu0 0.0
    %743 = vmatpush1.msra.mxu0 0.0
    %744 = vmatprep.subr.mxu0 0.0
    %745 = vmatpush1.msra.mxu0 0.0
    %746 = vmatprep.mubr.f32.mxu0 0.0
    %747 = vmatmul.mubr.f32.gmra.mrb[0].mxu0 %v680
    %v748 = vpop.f32.mrb[0].mxu0
    %v749 = vadd.f32 0.0, %v748
    %v750 = vpop.f32.mrb[0].mxu0
    %751 = vdwg.mxu0
    %v752 = vstv %s602
    %v753 = vmul.f32 %v752, %v749
    %755 = vrot.lane.b32.xlu0 %v753, 32
    %v756 = vpop.permute.xlu0 %755
    %v758 = vadd.f32 %v674, %v756
    %v760 = vrot.slane %v758, 5
    %761 = vrot.lane.b32.xlu0 %v760, 96
    %v762 = vpop.permute.xlu0 %761
    %v764 = vadd.f32 %v111, %v762
    %v765 = vtanh.pop %v764
    %s766 = sld [smem:[#allocation3 + $0x4]]
    %v768 = vrot.slane %v765, 3
    %v769 = vsel %vm113, %v768, 0
    %771 = vmatprep.subr.mxu0 0.0
    %772 = vmatpush1.msra.mxu0 %v83
    %773 = vmatprep.subr.mxu0 0.0
    %774 = vmatpush1.msra.mxu0 %v84
    %775 = vmatprep.subr.mxu0 0.0
    %776 = vmatpush1.msra.mxu0 %v85
    %777 = vmatprep.subr.mxu0 0.0
    %778 = vmatpush1.msra.mxu0 %v86
    %779 = vmatprep.subr.mxu0 0.0
    %780 = vmatpush1.msra.mxu0 0.0
    %781 = vmatprep.subr.mxu0 0.0
    %782 = vmatpush1.msra.mxu0 0.0
    %783 = vmatprep.subr.mxu0 0.0
    %784 = vmatpush1.msra.mxu0 0.0
    %785 = vmatprep.subr.mxu0 0.0
    %786 = vmatpush1.msra.mxu0 0.0
    %787 = vmatprep.subr.mxu0 0.0
    %788 = vmatpush1.msra.mxu0 0.0
    %789 = vmatprep.subr.mxu0 0.0
    %790 = vmatpush1.msra.mxu0 0.0
    %791 = vmatprep.subr.mxu0 0.0
    %792 = vmatpush1.msra.mxu0 0.0
    %793 = vmatprep.subr.mxu0 0.0
    %794 = vmatpush1.msra.mxu0 0.0
    %795 = vmatprep.subr.mxu0 0.0
    %796 = vmatpush1.msra.mxu0 0.0
    %797 = vmatprep.subr.mxu0 0.0
    %798 = vmatpush1.msra.mxu0 0.0
    %799 = vmatprep.subr.mxu0 0.0
    %800 = vmatpush1.msra.mxu0 0.0
    %801 = vmatprep.subr.mxu0 0.0
    %802 = vmatpush1.msra.mxu0 0.0
    %803 = vmatprep.subr.mxu0 0.0
    %804 = vmatpush1.msra.mxu0 0.0
    %805 = vmatprep.subr.mxu0 0.0
    %806 = vmatpush1.msra.mxu0 0.0
    %807 = vmatprep.subr.mxu0 0.0
    %808 = vmatpush1.msra.mxu0 0.0
    %809 = vmatprep.subr.mxu0 0.0
    %810 = vmatpush1.msra.mxu0 0.0
    %811 = vmatprep.subr.mxu0 0.0
    %812 = vmatpush1.msra.mxu0 0.0
    %813 = vmatprep.subr.mxu0 0.0
    %814 = vmatpush1.msra.mxu0 0.0
    %815 = vmatprep.subr.mxu0 0.0
    %816 = vmatpush1.msra.mxu0 0.0
    %817 = vmatprep.subr.mxu0 0.0
    %818 = vmatpush1.msra.mxu0 0.0
    %819 = vmatprep.subr.mxu0 0.0
    %820 = vmatpush1.msra.mxu0 0.0
    %821 = vmatprep.subr.mxu0 0.0
    %822 = vmatpush1.msra.mxu0 0.0
    %823 = vmatprep.subr.mxu0 0.0
    %824 = vmatpush1.msra.mxu0 0.0
    %825 = vmatprep.subr.mxu0 0.0
    %826 = vmatpush1.msra.mxu0 0.0
    %827 = vmatprep.subr.mxu0 0.0
    %828 = vmatpush1.msra.mxu0 0.0
    %829 = vmatprep.subr.mxu0 0.0
    %830 = vmatpush1.msra.mxu0 0.0
    %831 = vmatprep.subr.mxu0 0.0
    %832 = vmatpush1.msra.mxu0 0.0
    %833 = vmatprep.subr.mxu0 0.0
    %834 = vmatpush1.msra.mxu0 0.0
    %835 = vmatprep.mubr.f32.mxu0 0.0
    %836 = vmatmul.mubr.f32.gmra.mrb[0].mxu0 %v769
    %v837 = vpop.f32.mrb[0].mxu0
    %v838 = vadd.f32 0.0, %v837
    %v839 = vpop.f32.mrb[0].mxu0
    %840 = vdwg.mxu0
    %v841 = vadd.f32 %v838, %v87
    %v842 = vtanh.pop %v841
    %v844 = vsel %vm113, %v842, 0
    %846 = vmatprep.subr.mxu0 0.0
    %847 = vmatpush1.msra.mxu0 %v88
    %848 = vmatprep.subr.mxu0 0.0
    %849 = vmatpush1.msra.mxu0 %v89
    %850 = vmatprep.subr.mxu0 0.0
    %851 = vmatpush1.msra.mxu0 %v90
    %852 = vmatprep.subr.mxu0 0.0
    %853 = vmatpush1.msra.mxu0 %v91
    %854 = vmatprep.subr.mxu0 0.0
    %855 = vmatpush1.msra.mxu0 0.0
    %856 = vmatprep.subr.mxu0 0.0
    %857 = vmatpush1.msra.mxu0 0.0
    %858 = vmatprep.subr.mxu0 0.0
    %859 = vmatpush1.msra.mxu0 0.0
    %860 = vmatprep.subr.mxu0 0.0
    %861 = vmatpush1.msra.mxu0 0.0
    %862 = vmatprep.subr.mxu0 0.0
    %863 = vmatpush1.msra.mxu0 0.0
    %864 = vmatprep.subr.mxu0 0.0
    %865 = vmatpush1.msra.mxu0 0.0
    %866 = vmatprep.subr.mxu0 0.0
    %867 = vmatpush1.msra.mxu0 0.0
    %868 = vmatprep.subr.mxu0 0.0
    %869 = vmatpush1.msra.mxu0 0.0
    %870 = vmatprep.subr.mxu0 0.0
    %871 = vmatpush1.msra.mxu0 0.0
    %872 = vmatprep.subr.mxu0 0.0
    %873 = vmatpush1.msra.mxu0 0.0
    %874 = vmatprep.subr.mxu0 0.0
    %875 = vmatpush1.msra.mxu0 0.0
    %876 = vmatprep.subr.mxu0 0.0
    %877 = vmatpush1.msra.mxu0 0.0
    %878 = vmatprep.subr.mxu0 0.0
    %879 = vmatpush1.msra.mxu0 0.0
    %880 = vmatprep.subr.mxu0 0.0
    %881 = vmatpush1.msra.mxu0 0.0
    %882 = vmatprep.subr.mxu0 0.0
    %883 = vmatpush1.msra.mxu0 0.0
    %884 = vmatprep.subr.mxu0 0.0
    %885 = vmatpush1.msra.mxu0 0.0
    %886 = vmatprep.subr.mxu0 0.0
    %887 = vmatpush1.msra.mxu0 0.0
    %888 = vmatprep.subr.mxu0 0.0
    %889 = vmatpush1.msra.mxu0 0.0
    %890 = vmatprep.subr.mxu0 0.0
    %891 = vmatpush1.msra.mxu0 0.0
    %892 = vmatprep.subr.mxu0 0.0
    %893 = vmatpush1.msra.mxu0 0.0
    %894 = vmatprep.subr.mxu0 0.0
    %895 = vmatpush1.msra.mxu0 0.0
    %896 = vmatprep.subr.mxu0 0.0
    %897 = vmatpush1.msra.mxu0 0.0
    %898 = vmatprep.subr.mxu0 0.0
    %899 = vmatpush1.msra.mxu0 0.0
    %900 = vmatprep.subr.mxu0 0.0
    %901 = vmatpush1.msra.mxu0 0.0
    %902 = vmatprep.subr.mxu0 0.0
    %903 = vmatpush1.msra.mxu0 0.0
    %904 = vmatprep.subr.mxu0 0.0
    %905 = vmatpush1.msra.mxu0 0.0
    %906 = vmatprep.subr.mxu0 0.0
    %907 = vmatpush1.msra.mxu0 0.0
    %908 = vmatprep.subr.mxu0 0.0
    %909 = vmatpush1.msra.mxu0 0.0
    %910 = vmatprep.mubr.f32.mxu0 0.0
    %911 = vmatmul.mubr.f32.gmra.mrb[0].mxu0 %v844
    %v912 = vpop.f32.mrb[0].mxu0
    %v913 = vadd.f32 0.0, %v912
    %v914 = vpop.f32.mrb[0].mxu0
    %915 = vdwg.mxu0
    %v916 = vstv %s766
    %v917 = vmul.f32 %v916, %v913
    %919 = vrot.lane.b32.xlu0 %v917, 32
    %v920 = vpop.permute.xlu0 %919
    %v922 = vadd.f32 %v838, %v920
    %v924 = vrot.slane %v922, 4
    %925 = vrot.lane.b32.xlu0 %v924, 96
    %v926 = vpop.permute.xlu0 %925
    %v928 = vadd.f32 %v111, %v926
    %v929 = vtanh.pop %v928
    %s930 = sld [smem:[#allocation3 + $0x5]]
    %v932 = vrot.slane %v929, 4
    %v933 = vsel %vm113, %v932, 0
    %935 = vmatprep.subr.mxu0 0.0
    %936 = vmatpush1.msra.mxu0 %v83
    %937 = vmatprep.subr.mxu0 0.0
    %938 = vmatpush1.msra.mxu0 %v84
    %939 = vmatprep.subr.mxu0 0.0
    %940 = vmatpush1.msra.mxu0 %v85
    %941 = vmatprep.subr.mxu0 0.0
    %942 = vmatpush1.msra.mxu0 %v86
    %943 = vmatprep.subr.mxu0 0.0
    %944 = vmatpush1.msra.mxu0 0.0
    %945 = vmatprep.subr.mxu0 0.0
    %946 = vmatpush1.msra.mxu0 0.0
    %947 = vmatprep.subr.mxu0 0.0
    %948 = vmatpush1.msra.mxu0 0.0
    %949 = vmatprep.subr.mxu0 0.0
    %950 = vmatpush1.msra.mxu0 0.0
    %951 = vmatprep.subr.mxu0 0.0
    %952 = vmatpush1.msra.mxu0 0.0
    %953 = vmatprep.subr.mxu0 0.0
    %954 = vmatpush1.msra.mxu0 0.0
    %955 = vmatprep.subr.mxu0 0.0
    %956 = vmatpush1.msra.mxu0 0.0
    %957 = vmatprep.subr.mxu0 0.0
    %958 = vmatpush1.msra.mxu0 0.0
    %959 = vmatprep.subr.mxu0 0.0
    %960 = vmatpush1.msra.mxu0 0.0
    %961 = vmatprep.subr.mxu0 0.0
    %962 = vmatpush1.msra.mxu0 0.0
    %963 = vmatprep.subr.mxu0 0.0
    %964 = vmatpush1.msra.mxu0 0.0
    %965 = vmatprep.subr.mxu0 0.0
    %966 = vmatpush1.msra.mxu0 0.0
    %967 = vmatprep.subr.mxu0 0.0
    %968 = vmatpush1.msra.mxu0 0.0
    %969 = vmatprep.subr.mxu0 0.0
    %970 = vmatpush1.msra.mxu0 0.0
    %971 = vmatprep.subr.mxu0 0.0
    %972 = vmatpush1.msra.mxu0 0.0
    %973 = vmatprep.subr.mxu0 0.0
    %974 = vmatpush1.msra.mxu0 0.0
    %975 = vmatprep.subr.mxu0 0.0
    %976 = vmatpush1.msra.mxu0 0.0
    %977 = vmatprep.subr.mxu0 0.0
    %978 = vmatpush1.msra.mxu0 0.0
    %979 = vmatprep.subr.mxu0 0.0
    %980 = vmatpush1.msra.mxu0 0.0
    %981 = vmatprep.subr.mxu0 0.0
    %982 = vmatpush1.msra.mxu0 0.0
    %983 = vmatprep.subr.mxu0 0.0
    %984 = vmatpush1.msra.mxu0 0.0
    %985 = vmatprep.subr.mxu0 0.0
    %986 = vmatpush1.msra.mxu0 0.0
    %987 = vmatprep.subr.mxu0 0.0
    %988 = vmatpush1.msra.mxu0 0.0
    %989 = vmatprep.subr.mxu0 0.0
    %990 = vmatpush1.msra.mxu0 0.0
    %991 = vmatprep.subr.mxu0 0.0
    %992 = vmatpush1.msra.mxu0 0.0
    %993 = vmatprep.subr.mxu0 0.0
    %994 = vmatpush1.msra.mxu0 0.0
    %995 = vmatprep.subr.mxu0 0.0
    %996 = vmatpush1.msra.mxu0 0.0
    %997 = vmatprep.subr.mxu0 0.0
    %998 = vmatpush1.msra.mxu0 0.0
    %999 = vmatprep.mubr.f32.mxu0 0.0
    %1000 = vmatmul.mubr.f32.gmra.mrb[0].mxu0 %v933
    %v1001 = vpop.f32.mrb[0].mxu0
    %v1002 = vadd.f32 0.0, %v1001
    %v1003 = vpop.f32.mrb[0].mxu0
    %1004 = vdwg.mxu0
    %v1005 = vadd.f32 %v1002, %v87
    %v1006 = vtanh.pop %v1005
    %v1008 = vsel %vm113, %v1006, 0
    %1010 = vmatprep.subr.mxu0 0.0
    %1011 = vmatpush1.msra.mxu0 %v88
    %1012 = vmatprep.subr.mxu0 0.0
    %1013 = vmatpush1.msra.mxu0 %v89
    %1014 = vmatprep.subr.mxu0 0.0
    %1015 = vmatpush1.msra.mxu0 %v90
    %1016 = vmatprep.subr.mxu0 0.0
    %1017 = vmatpush1.msra.mxu0 %v91
    %1018 = vmatprep.subr.mxu0 0.0
    %1019 = vmatpush1.msra.mxu0 0.0
    %1020 = vmatprep.subr.mxu0 0.0
    %1021 = vmatpush1.msra.mxu0 0.0
    %1022 = vmatprep.subr.mxu0 0.0
    %1023 = vmatpush1.msra.mxu0 0.0
    %1024 = vmatprep.subr.mxu0 0.0
    %1025 = vmatpush1.msra.mxu0 0.0
    %1026 = vmatprep.subr.mxu0 0.0
    %1027 = vmatpush1.msra.mxu0 0.0
    %1028 = vmatprep.subr.mxu0 0.0
    %1029 = vmatpush1.msra.mxu0 0.0
    %1030 = vmatprep.subr.mxu0 0.0
    %1031 = vmatpush1.msra.mxu0 0.0
    %1032 = vmatprep.subr.mxu0 0.0
    %1033 = vmatpush1.msra.mxu0 0.0
    %1034 = vmatprep.subr.mxu0 0.0
    %1035 = vmatpush1.msra.mxu0 0.0
    %1036 = vmatprep.subr.mxu0 0.0
    %1037 = vmatpush1.msra.mxu0 0.0
    %1038 = vmatprep.subr.mxu0 0.0
    %1039 = vmatpush1.msra.mxu0 0.0
    %1040 = vmatprep.subr.mxu0 0.0
    %1041 = vmatpush1.msra.mxu0 0.0
    %1042 = vmatprep.subr.mxu0 0.0
    %1043 = vmatpush1.msra.mxu0 0.0
    %1044 = vmatprep.subr.mxu0 0.0
    %1045 = vmatpush1.msra.mxu0 0.0
    %1046 = vmatprep.subr.mxu0 0.0
    %1047 = vmatpush1.msra.mxu0 0.0
    %1048 = vmatprep.subr.mxu0 0.0
    %1049 = vmatpush1.msra.mxu0 0.0
    %1050 = vmatprep.subr.mxu0 0.0
    %1051 = vmatpush1.msra.mxu0 0.0
    %1052 = vmatprep.subr.mxu0 0.0
    %1053 = vmatpush1.msra.mxu0 0.0
    %1054 = vmatprep.subr.mxu0 0.0
    %1055 = vmatpush1.msra.mxu0 0.0
    %1056 = vmatprep.subr.mxu0 0.0
    %1057 = vmatpush1.msra.mxu0 0.0
    %1058 = vmatprep.subr.mxu0 0.0
    %1059 = vmatpush1.msra.mxu0 0.0
    %1060 = vmatprep.subr.mxu0 0.0
    %1061 = vmatpush1.msra.mxu0 0.0
    %1062 = vmatprep.subr.mxu0 0.0
    %1063 = vmatpush1.msra.mxu0 0.0
    %1064 = vmatprep.subr.mxu0 0.0
    %1065 = vmatpush1.msra.mxu0 0.0
    %1066 = vmatprep.subr.mxu0 0.0
    %1067 = vmatpush1.msra.mxu0 0.0
    %1068 = vmatprep.subr.mxu0 0.0
    %1069 = vmatpush1.msra.mxu0 0.0
    %1070 = vmatprep.subr.mxu0 0.0
    %1071 = vmatpush1.msra.mxu0 0.0
    %1072 = vmatprep.subr.mxu0 0.0
    %1073 = vmatpush1.msra.mxu0 0.0
    %1074 = vmatprep.mubr.f32.mxu0 0.0
    %1075 = vmatmul.mubr.f32.gmra.mrb[0].mxu0 %v1008
    %v1076 = vpop.f32.mrb[0].mxu0
    %v1077 = vadd.f32 0.0, %v1076
    %v1078 = vpop.f32.mrb[0].mxu0
    %1079 = vdwg.mxu0
    %v1080 = vstv %s930
    %v1081 = vmul.f32 %v1080, %v1077
    %1083 = vrot.lane.b32.xlu0 %v1081, 32
    %v1084 = vpop.permute.xlu0 %1083
    %v1086 = vadd.f32 %v1002, %v1084
    %v1088 = vrot.slane %v1086, 3
    %1089 = vrot.lane.b32.xlu0 %v1088, 96
    %v1090 = vpop.permute.xlu0 %1089
    %v1092 = vadd.f32 %v111, %v1090
    %v1093 = vtanh.pop %v1092
    %s1094 = sld [smem:[#allocation3 + $0x6]]
    %v1096 = vrot.slane %v1093, 5
    %v1097 = vsel %vm113, %v1096, 0
    %1099 = vmatprep.subr.mxu0 0.0
    %1100 = vmatpush1.msra.mxu0 %v83
    %1101 = vmatprep.subr.mxu0 0.0
    %1102 = vmatpush1.msra.mxu0 %v84
    %1103 = vmatprep.subr.mxu0 0.0
    %1104 = vmatpush1.msra.mxu0 %v85
    %1105 = vmatprep.subr.mxu0 0.0
    %1106 = vmatpush1.msra.mxu0 %v86
    %1107 = vmatprep.subr.mxu0 0.0
    %1108 = vmatpush1.msra.mxu0 0.0
    %1109 = vmatprep.subr.mxu0 0.0
    %1110 = vmatpush1.msra.mxu0 0.0
    %1111 = vmatprep.subr.mxu0 0.0
    %1112 = vmatpush1.msra.mxu0 0.0
    %1113 = vmatprep.subr.mxu0 0.0
    %1114 = vmatpush1.msra.mxu0 0.0
    %1115 = vmatprep.subr.mxu0 0.0
    %1116 = vmatpush1.msra.mxu0 0.0
    %1117 = vmatprep.subr.mxu0 0.0
    %1118 = vmatpush1.msra.mxu0 0.0
    %1119 = vmatprep.subr.mxu0 0.0
    %1120 = vmatpush1.msra.mxu0 0.0
    %1121 = vmatprep.subr.mxu0 0.0
    %1122 = vmatpush1.msra.mxu0 0.0
    %1123 = vmatprep.subr.mxu0 0.0
    %1124 = vmatpush1.msra.mxu0 0.0
    %1125 = vmatprep.subr.mxu0 0.0
    %1126 = vmatpush1.msra.mxu0 0.0
    %1127 = vmatprep.subr.mxu0 0.0
    %1128 = vmatpush1.msra.mxu0 0.0
    %1129 = vmatprep.subr.mxu0 0.0
    %1130 = vmatpush1.msra.mxu0 0.0
    %1131 = vmatprep.subr.mxu0 0.0
    %1132 = vmatpush1.msra.mxu0 0.0
    %1133 = vmatprep.subr.mxu0 0.0
    %1134 = vmatpush1.msra.mxu0 0.0
    %1135 = vmatprep.subr.mxu0 0.0
    %1136 = vmatpush1.msra.mxu0 0.0
    %1137 = vmatprep.subr.mxu0 0.0
    %1138 = vmatpush1.msra.mxu0 0.0
    %1139 = vmatprep.subr.mxu0 0.0
    %1140 = vmatpush1.msra.mxu0 0.0
    %1141 = vmatprep.subr.mxu0 0.0
    %1142 = vmatpush1.msra.mxu0 0.0
    %1143 = vmatprep.subr.mxu0 0.0
    %1144 = vmatpush1.msra.mxu0 0.0
    %1145 = vmatprep.subr.mxu0 0.0
    %1146 = vmatpush1.msra.mxu0 0.0
    %1147 = vmatprep.subr.mxu0 0.0
    %1148 = vmatpush1.msra.mxu0 0.0
    %1149 = vmatprep.subr.mxu0 0.0
    %1150 = vmatpush1.msra.mxu0 0.0
    %1151 = vmatprep.subr.mxu0 0.0
    %1152 = vmatpush1.msra.mxu0 0.0
    %1153 = vmatprep.subr.mxu0 0.0
    %1154 = vmatpush1.msra.mxu0 0.0
    %1155 = vmatprep.subr.mxu0 0.0
    %1156 = vmatpush1.msra.mxu0 0.0
    %1157 = vmatprep.subr.mxu0 0.0
    %1158 = vmatpush1.msra.mxu0 0.0
    %1159 = vmatprep.subr.mxu0 0.0
    %1160 = vmatpush1.msra.mxu0 0.0
    %1161 = vmatprep.subr.mxu0 0.0
    %1162 = vmatpush1.msra.mxu0 0.0
    %1163 = vmatprep.mubr.f32.mxu0 0.0
    %1164 = vmatmul.mubr.f32.gmra.mrb[0].mxu0 %v1097
    %v1165 = vpop.f32.mrb[0].mxu0
    %v1166 = vadd.f32 0.0, %v1165
    %v1167 = vpop.f32.mrb[0].mxu0
    %1168 = vdwg.mxu0
    %v1169 = vadd.f32 %v1166, %v87
    %v1170 = vtanh.pop %v1169
    %v1172 = vsel %vm113, %v1170, 0
    %1174 = vmatprep.subr.mxu0 0.0
    %1175 = vmatpush1.msra.mxu0 %v88
    %1176 = vmatprep.subr.mxu0 0.0
    %1177 = vmatpush1.msra.mxu0 %v89
    %1178 = vmatprep.subr.mxu0 0.0
    %1179 = vmatpush1.msra.mxu0 %v90
    %1180 = vmatprep.subr.mxu0 0.0
    %1181 = vmatpush1.msra.mxu0 %v91
    %1182 = vmatprep.subr.mxu0 0.0
    %1183 = vmatpush1.msra.mxu0 0.0
    %1184 = vmatprep.subr.mxu0 0.0
    %1185 = vmatpush1.msra.mxu0 0.0
    %1186 = vmatprep.subr.mxu0 0.0
    %1187 = vmatpush1.msra.mxu0 0.0
    %1188 = vmatprep.subr.mxu0 0.0
    %1189 = vmatpush1.msra.mxu0 0.0
    %1190 = vmatprep.subr.mxu0 0.0
    %1191 = vmatpush1.msra.mxu0 0.0
    %1192 = vmatprep.subr.mxu0 0.0
    %1193 = vmatpush1.msra.mxu0 0.0
    %1194 = vmatprep.subr.mxu0 0.0
    %1195 = vmatpush1.msra.mxu0 0.0
    %1196 = vmatprep.subr.mxu0 0.0
    %1197 = vmatpush1.msra.mxu0 0.0
    %1198 = vmatprep.subr.mxu0 0.0
    %1199 = vmatpush1.msra.mxu0 0.0
    %1200 = vmatprep.subr.mxu0 0.0
    %1201 = vmatpush1.msra.mxu0 0.0
    %1202 = vmatprep.subr.mxu0 0.0
    %1203 = vmatpush1.msra.mxu0 0.0
    %1204 = vmatprep.subr.mxu0 0.0
    %1205 = vmatpush1.msra.mxu0 0.0
    %1206 = vmatprep.subr.mxu0 0.0
    %1207 = vmatpush1.msra.mxu0 0.0
    %1208 = vmatprep.subr.mxu0 0.0
    %1209 = vmatpush1.msra.mxu0 0.0
    %1210 = vmatprep.subr.mxu0 0.0
    %1211 = vmatpush1.msra.mxu0 0.0
    %1212 = vmatprep.subr.mxu0 0.0
    %1213 = vmatpush1.msra.mxu0 0.0
    %1214 = vmatprep.subr.mxu0 0.0
    %1215 = vmatpush1.msra.mxu0 0.0
    %1216 = vmatprep.subr.mxu0 0.0
    %1217 = vmatpush1.msra.mxu0 0.0
    %1218 = vmatprep.subr.mxu0 0.0
    %1219 = vmatpush1.msra.mxu0 0.0
    %1220 = vmatprep.subr.mxu0 0.0
    %1221 = vmatpush1.msra.mxu0 0.0
    %1222 = vmatprep.subr.mxu0 0.0
    %1223 = vmatpush1.msra.mxu0 0.0
    %1224 = vmatprep.subr.mxu0 0.0
    %1225 = vmatpush1.msra.mxu0 0.0
    %1226 = vmatprep.subr.mxu0 0.0
    %1227 = vmatpush1.msra.mxu0 0.0
    %1228 = vmatprep.subr.mxu0 0.0
    %1229 = vmatpush1.msra.mxu0 0.0
    %1230 = vmatprep.subr.mxu0 0.0
    %1231 = vmatpush1.msra.mxu0 0.0
    %1232 = vmatprep.subr.mxu0 0.0
    %1233 = vmatpush1.msra.mxu0 0.0
    %1234 = vmatprep.subr.mxu0 0.0
    %1235 = vmatpush1.msra.mxu0 0.0
    %1236 = vmatprep.subr.mxu0 0.0
    %1237 = vmatpush1.msra.mxu0 0.0
    %1238 = vmatprep.mubr.f32.mxu0 0.0
    %1239 = vmatmul.mubr.f32.gmra.mrb[0].mxu0 %v1172
    %v1240 = vpop.f32.mrb[0].mxu0
    %v1241 = vadd.f32 0.0, %v1240
    %v1242 = vpop.f32.mrb[0].mxu0
    %1243 = vdwg.mxu0
    %v1244 = vstv %s1094
    %v1245 = vmul.f32 %v1244, %v1241
    %1247 = vrot.lane.b32.xlu0 %v1245, 32
    %v1248 = vpop.permute.xlu0 %1247
    %v1250 = vadd.f32 %v1166, %v1248
    %v1252 = vrot.slane %v1250, 2
    %1253 = vrot.lane.b32.xlu0 %v1252, 96
    %v1254 = vpop.permute.xlu0 %1253
    %v1256 = vadd.f32 %v111, %v1254
    %v1257 = vtanh.pop %v1256
    %s1258 = sld [smem:[#allocation3 + $0x7]]
    %v1260 = vrot.slane %v1257, 6
    %v1261 = vsel %vm113, %v1260, 0
    %1263 = vmatprep.subr.mxu0 0.0
    %1264 = vmatpush1.msra.mxu0 %v83
    %1265 = vmatprep.subr.mxu0 0.0
    %1266 = vmatpush1.msra.mxu0 %v84
    %1267 = vmatprep.subr.mxu0 0.0
    %1268 = vmatpush1.msra.mxu0 %v85
    %1269 = vmatprep.subr.mxu0 0.0
    %1270 = vmatpush1.msra.mxu0 %v86
    %1271 = vmatprep.subr.mxu0 0.0
    %1272 = vmatpush1.msra.mxu0 0.0
    %1273 = vmatprep.subr.mxu0 0.0
    %1274 = vmatpush1.msra.mxu0 0.0
    %1275 = vmatprep.subr.mxu0 0.0
    %1276 = vmatpush1.msra.mxu0 0.0
    %1277 = vmatprep.subr.mxu0 0.0
    %1278 = vmatpush1.msra.mxu0 0.0
    %1279 = vmatprep.subr.mxu0 0.0
    %1280 = vmatpush1.msra.mxu0 0.0
    %1281 = vmatprep.subr.mxu0 0.0
    %1282 = vmatpush1.msra.mxu0 0.0
    %1283 = vmatprep.subr.mxu0 0.0
    %1284 = vmatpush1.msra.mxu0 0.0
    %1285 = vmatprep.subr.mxu0 0.0
    %1286 = vmatpush1.msra.mxu0 0.0
    %1287 = vmatprep.subr.mxu0 0.0
    %1288 = vmatpush1.msra.mxu0 0.0
    %1289 = vmatprep.subr.mxu0 0.0
    %1290 = vmatpush1.msra.mxu0 0.0
    %1291 = vmatprep.subr.mxu0 0.0
    %1292 = vmatpush1.msra.mxu0 0.0
    %1293 = vmatprep.subr.mxu0 0.0
    %1294 = vmatpush1.msra.mxu0 0.0
    %1295 = vmatprep.subr.mxu0 0.0
    %1296 = vmatpush1.msra.mxu0 0.0
    %1297 = vmatprep.subr.mxu0 0.0
    %1298 = vmatpush1.msra.mxu0 0.0
    %1299 = vmatprep.subr.mxu0 0.0
    %1300 = vmatpush1.msra.mxu0 0.0
    %1301 = vmatprep.subr.mxu0 0.0
    %1302 = vmatpush1.msra.mxu0 0.0
    %1303 = vmatprep.subr.mxu0 0.0
    %1304 = vmatpush1.msra.mxu0 0.0
    %1305 = vmatprep.subr.mxu0 0.0
    %1306 = vmatpush1.msra.mxu0 0.0
    %1307 = vmatprep.subr.mxu0 0.0
    %1308 = vmatpush1.msra.mxu0 0.0
    %1309 = vmatprep.subr.mxu0 0.0
    %1310 = vmatpush1.msra.mxu0 0.0
    %1311 = vmatprep.subr.mxu0 0.0
    %1312 = vmatpush1.msra.mxu0 0.0
    %1313 = vmatprep.subr.mxu0 0.0
    %1314 = vmatpush1.msra.mxu0 0.0
    %1315 = vmatprep.subr.mxu0 0.0
    %1316 = vmatpush1.msra.mxu0 0.0
    %1317 = vmatprep.subr.mxu0 0.0
    %1318 = vmatpush1.msra.mxu0 0.0
    %1319 = vmatprep.subr.mxu0 0.0
    %1320 = vmatpush1.msra.mxu0 0.0
    %1321 = vmatprep.subr.mxu0 0.0
    %1322 = vmatpush1.msra.mxu0 0.0
    %1323 = vmatprep.subr.mxu0 0.0
    %1324 = vmatpush1.msra.mxu0 0.0
    %1325 = vmatprep.subr.mxu0 0.0
    %1326 = vmatpush1.msra.mxu0 0.0
    %1327 = vmatprep.mubr.f32.mxu0 0.0
    %1328 = vmatmul.mubr.f32.gmra.mrb[0].mxu0 %v1261
    %v1329 = vpop.f32.mrb[0].mxu0
    %v1330 = vadd.f32 0.0, %v1329
    %v1331 = vpop.f32.mrb[0].mxu0
    %1332 = vdwg.mxu0
    %v1333 = vadd.f32 %v1330, %v87
    %v1334 = vtanh.pop %v1333
    %v1336 = vsel %vm113, %v1334, 0
    %1338 = vmatprep.subr.mxu0 0.0
    %1339 = vmatpush1.msra.mxu0 %v88
    %1340 = vmatprep.subr.mxu0 0.0
    %1341 = vmatpush1.msra.mxu0 %v89
    %1342 = vmatprep.subr.mxu0 0.0
    %1343 = vmatpush1.msra.mxu0 %v90
    %1344 = vmatprep.subr.mxu0 0.0
    %1345 = vmatpush1.msra.mxu0 %v91
    %1346 = vmatprep.subr.mxu0 0.0
    %1347 = vmatpush1.msra.mxu0 0.0
    %1348 = vmatprep.subr.mxu0 0.0
    %1349 = vmatpush1.msra.mxu0 0.0
    %1350 = vmatprep.subr.mxu0 0.0
    %1351 = vmatpush1.msra.mxu0 0.0
    %1352 = vmatprep.subr.mxu0 0.0
    %1353 = vmatpush1.msra.mxu0 0.0
    %1354 = vmatprep.subr.mxu0 0.0
    %1355 = vmatpush1.msra.mxu0 0.0
    %1356 = vmatprep.subr.mxu0 0.0
    %1357 = vmatpush1.msra.mxu0 0.0
    %1358 = vmatprep.subr.mxu0 0.0
    %1359 = vmatpush1.msra.mxu0 0.0
    %1360 = vmatprep.subr.mxu0 0.0
    %1361 = vmatpush1.msra.mxu0 0.0
    %1362 = vmatprep.subr.mxu0 0.0
    %1363 = vmatpush1.msra.mxu0 0.0
    %1364 = vmatprep.subr.mxu0 0.0
    %1365 = vmatpush1.msra.mxu0 0.0
    %1366 = vmatprep.subr.mxu0 0.0
    %1367 = vmatpush1.msra.mxu0 0.0
    %1368 = vmatprep.subr.mxu0 0.0
    %1369 = vmatpush1.msra.mxu0 0.0
    %1370 = vmatprep.subr.mxu0 0.0
    %1371 = vmatpush1.msra.mxu0 0.0
    %1372 = vmatprep.subr.mxu0 0.0
    %1373 = vmatpush1.msra.mxu0 0.0
    %1374 = vmatprep.subr.mxu0 0.0
    %1375 = vmatpush1.msra.mxu0 0.0
    %1376 = vmatprep.subr.mxu0 0.0
    %1377 = vmatpush1.msra.mxu0 0.0
    %1378 = vmatprep.subr.mxu0 0.0
    %1379 = vmatpush1.msra.mxu0 0.0
    %1380 = vmatprep.subr.mxu0 0.0
    %1381 = vmatpush1.msra.mxu0 0.0
    %1382 = vmatprep.subr.mxu0 0.0
    %1383 = vmatpush1.msra.mxu0 0.0
    %1384 = vmatprep.subr.mxu0 0.0
    %1385 = vmatpush1.msra.mxu0 0.0
    %1386 = vmatprep.subr.mxu0 0.0
    %1387 = vmatpush1.msra.mxu0 0.0
    %1388 = vmatprep.subr.mxu0 0.0
    %1389 = vmatpush1.msra.mxu0 0.0
    %1390 = vmatprep.subr.mxu0 0.0
    %1391 = vmatpush1.msra.mxu0 0.0
    %1392 = vmatprep.subr.mxu0 0.0
    %1393 = vmatpush1.msra.mxu0 0.0
    %1394 = vmatprep.subr.mxu0 0.0
    %1395 = vmatpush1.msra.mxu0 0.0
    %1396 = vmatprep.subr.mxu0 0.0
    %1397 = vmatpush1.msra.mxu0 0.0
    %1398 = vmatprep.subr.mxu0 0.0
    %1399 = vmatpush1.msra.mxu0 0.0
    %1400 = vmatprep.subr.mxu0 0.0
    %1401 = vmatpush1.msra.mxu0 0.0
    %1402 = vmatprep.mubr.f32.mxu0 0.0
    %1403 = vmatmul.mubr.f32.gmra.mrb[0].mxu0 %v1336
    %v1404 = vpop.f32.mrb[0].mxu0
    %v1405 = vadd.f32 0.0, %v1404
    %v1406 = vpop.f32.mrb[0].mxu0
    %1407 = vdwg.mxu0
    %v1408 = vstv %s1258
    %v1409 = vmul.f32 %v1408, %v1405
    %1411 = vrot.lane.b32.xlu0 %v1409, 32
    %v1412 = vpop.permute.xlu0 %1411
    %v1414 = vadd.f32 %v1330, %v1412
    %v1416 = vrot.slane %v1414, 1
    %1417 = vrot.lane.b32.xlu0 %v1416, 96
    %v1418 = vpop.permute.xlu0 %1417
    %v1420 = vadd.f32 %v111, %v1418
    %v1421 = vtanh.pop %v1420
    %v1422 = vld [vmem:[%s7] sm:$0xff]
    %v1423 = vld [vmem:[%s7 + $0x8] sm:$0xff]
    %v1424 = vld [vmem:[%s7 + $0x10] sm:$0xff]
    %v1425 = vld [vmem:[%s7 + $0x18] sm:$0xff]
    %v1426 = vld [vmem:[#allocation2] sm:$0x1]
    %v1428 = vrot.slane %v1421, 7
    %v1429 = vsel %vm113, %v1428, 0
    %1431 = vmatprep.subr.mxu0 0.0
    %1432 = vmatpush1.msra.mxu0 %v1422
    %1433 = vmatprep.subr.mxu0 0.0
    %1434 = vmatpush1.msra.mxu0 %v1423
    %1435 = vmatprep.subr.mxu0 0.0
    %1436 = vmatpush1.msra.mxu0 %v1424
    %1437 = vmatprep.subr.mxu0 0.0
    %1438 = vmatpush1.msra.mxu0 %v1425
    %1439 = vmatprep.subr.mxu0 0.0
    %1440 = vmatpush1.msra.mxu0 0.0
    %1441 = vmatprep.subr.mxu0 0.0
    %1442 = vmatpush1.msra.mxu0 0.0
    %1443 = vmatprep.subr.mxu0 0.0
    %1444 = vmatpush1.msra.mxu0 0.0
    %1445 = vmatprep.subr.mxu0 0.0
    %1446 = vmatpush1.msra.mxu0 0.0
    %1447 = vmatprep.subr.mxu0 0.0
    %1448 = vmatpush1.msra.mxu0 0.0
    %1449 = vmatprep.subr.mxu0 0.0
    %1450 = vmatpush1.msra.mxu0 0.0
    %1451 = vmatprep.subr.mxu0 0.0
    %1452 = vmatpush1.msra.mxu0 0.0
    %1453 = vmatprep.subr.mxu0 0.0
    %1454 = vmatpush1.msra.mxu0 0.0
    %1455 = vmatprep.subr.mxu0 0.0
    %1456 = vmatpush1.msra.mxu0 0.0
    %1457 = vmatprep.subr.mxu0 0.0
    %1458 = vmatpush1.msra.mxu0 0.0
    %1459 = vmatprep.subr.mxu0 0.0
    %1460 = vmatpush1.msra.mxu0 0.0
    %1461 = vmatprep.subr.mxu0 0.0
    %1462 = vmatpush1.msra.mxu0 0.0
    %1463 = vmatprep.subr.mxu0 0.0
    %1464 = vmatpush1.msra.mxu0 0.0
    %1465 = vmatprep.subr.mxu0 0.0
    %1466 = vmatpush1.msra.mxu0 0.0
    %1467 = vmatprep.subr.mxu0 0.0
    %1468 = vmatpush1.msra.mxu0 0.0
    %1469 = vmatprep.subr.mxu0 0.0
    %1470 = vmatpush1.msra.mxu0 0.0
    %1471 = vmatprep.subr.mxu0 0.0
    %1472 = vmatpush1.msra.mxu0 0.0
    %1473 = vmatprep.subr.mxu0 0.0
    %1474 = vmatpush1.msra.mxu0 0.0
    %1475 = vmatprep.subr.mxu0 0.0
    %1476 = vmatpush1.msra.mxu0 0.0
    %1477 = vmatprep.subr.mxu0 0.0
    %1478 = vmatpush1.msra.mxu0 0.0
    %1479 = vmatprep.subr.mxu0 0.0
    %1480 = vmatpush1.msra.mxu0 0.0
    %1481 = vmatprep.subr.mxu0 0.0
    %1482 = vmatpush1.msra.mxu0 0.0
    %1483 = vmatprep.subr.mxu0 0.0
    %1484 = vmatpush1.msra.mxu0 0.0
    %1485 = vmatprep.subr.mxu0 0.0
    %1486 = vmatpush1.msra.mxu0 0.0
    %1487 = vmatprep.subr.mxu0 0.0
    %1488 = vmatpush1.msra.mxu0 0.0
    %1489 = vmatprep.subr.mxu0 0.0
    %1490 = vmatpush1.msra.mxu0 0.0
    %1491 = vmatprep.subr.mxu0 0.0
    %1492 = vmatpush1.msra.mxu0 0.0
    %1493 = vmatprep.subr.mxu0 0.0
    %1494 = vmatpush1.msra.mxu0 0.0
    %1495 = vmatprep.mubr.f32.mxu0 0.0
    %1496 = vmatmul.mubr.f32.gmra.mrb[0].mxu0 %v1429
    %v1497 = vpop.f32.mrb[0].mxu0
    %v1498 = vadd.f32 %v1426, %v1497
    %v1499 = vpop.f32.mrb[0].mxu0
    %1500 = vdwg.mxu0
    %vm1501 = vcmask 0
    %1502 = vst.msk [vmem:[#allocation11] sm:$0x1] %vm1501, %v1498
    // Predicated region
    $region54: #{tpu_custom_call.1} parent=1 // pred_check
      _
    $region55: #{tpu_custom_call.1} parent=1 // pred_check_branch
      %1504 = sbr.rel (0) target = $region57
    $region56: #{tpu_custom_call.1} parent=1 // pred_region
      %s1506 = ssub.s32 16, 16
      %1507 = vsyncadd [#allocation5], %s1506
      %s1509 = sshll.u32 [#allocation11], 4
      %s1510 = int_to_ptr.vmem [resolvable:$true] %s1509
      %1512 = dma.vmem_to_hbm [thread:$0]  %s1510, 16, %s9, [#allocation5]
    $region57: #{tpu_custom_call.1} parent=1 // pred_fallthru
      _
    // Predicated region
    $region58: #{tpu_custom_call.1} parent=1 // pred_check
      _
    $region59: #{tpu_custom_call.1} parent=1 // pred_check_branch
      %1514 = sbr.rel (0) target = $region61
    $region60: #{tpu_custom_call.1} parent=1 // pred_region
      %1515 = dma.done [#allocation5], 16
    $region61: #{tpu_custom_call.1} parent=1 // pred_fallthru
      _
    %1516 = vsyncpa [#allocation4], 1
    %1517 = vsyncpa [#allocation9], 1
    %1518 = vsyncpa [#allocation5], 1
    %1519 = vsyncpa [#allocation6], 1

</llo_original>
